<compile_context>
chip_gen: v7x
topology: tpu7x:2x2x1
jax: 0.10.0
libtpu: 0.0.40
codegen_flags: <defaults>
</compile_context>

<pallas_src>
import math
import functools
import numpy as np

import jax
import jax.numpy as jnp
from jax import lax
from jax.experimental import pallas as pl
from jax.experimental.pallas import tpu as pltpu


# ----------------------------------------------------------------------------
# Pallas kernel: the full encoder stack; grid = (batch_blocks, num_layers).
# ----------------------------------------------------------------------------
def encoder_stack_kernel(x_ref, mask_ref,
                         wqkv_ref, bqkv_ref, wo_ref, bo_ref,
                         wpre_ref, bpre_ref, wsuf_ref, bsuf_ref,
                         g1_ref, beta1_ref, g2_ref, beta2_ref,
                         out_ref, attw_ref,
                         *, num_heads, batch_blk, seq_len, d_model):
    H, Bb, S, D = num_heads, batch_blk, seq_len, d_model
    dh = D // H
    M = Bb * S
    scale = 1.0 / math.sqrt(dh)

    # Layer 0: seed the VMEM-resident carry.  out_ref's block index is constant
    # along the layer grid axis, so it stays resident across layers and only
    # writes back to HBM once per batch block.
    @pl.when(pl.program_id(1) == 0)
    def _():
        out_ref[...] = x_ref[...]

    x = out_ref[...]                                          # (M, D) f32 carry

    # ---- fused QKV projection (weights pre-transposed [in, out], bf16) ------
    qkv = jnp.dot(x.astype(jnp.bfloat16), wqkv_ref[0],
                  preferred_element_type=jnp.float32) + bqkv_ref[0]    # (M, 3D)

    # Fold (head, batch) onto the leading axis: n = h * Bb + b.
    def fold_heads(off, mult=None):
        parts = []
        for h in range(H):
            blk = qkv[:, off + h * dh: off + (h + 1) * dh]
            if mult is not None:
                blk = blk * mult
            parts.append(blk.reshape(Bb, S, dh))
        return jnp.concatenate(parts, axis=0).astype(jnp.bfloat16)     # (H*Bb,S,dh)

    q = fold_heads(0, scale)          # pre-scaled by 1/sqrt(dh) (torch MHA does this)
    k = fold_heads(D)
    v = fold_heads(2 * D)

    # ---- causal attention: all heads & batch rows in one batched matmul -----
    s = jnp.einsum('nqd,nkd->nqk', q, k,
                   preferred_element_type=jnp.float32)                 # (H*Bb,S,S)
    s = s + mask_ref[...][None, :, :]           # precomputed 0 / -1e30 bias (f32)

    m = jnp.max(s, axis=-1, keepdims=True)
    e = jnp.exp(s - m)
    p = e / jnp.sum(e, axis=-1, keepdims=True)  # exact softmax (weights are output)

    ctx = jnp.einsum('nqk,nkd->nqd', p.astype(jnp.bfloat16), v,
                     preferred_element_type=jnp.float32)               # (H*Bb,S,dh)

    # ---- head merge folded into the output projection (no lane-axis concat) --
    # wo is stored host-side as (H, dh, D); ctx head slices are leading slices.
    attn_out = jnp.zeros((M, D), jnp.float32)
    w_acc = jnp.zeros((Bb, S, S), jnp.float32)
    for h in range(H):
        w_acc = w_acc + p[h * Bb:(h + 1) * Bb]
        ch = ctx[h * Bb:(h + 1) * Bb].reshape(M, dh).astype(jnp.bfloat16)
        attn_out = attn_out + jnp.dot(ch, wo_ref[0, h],
                                      preferred_element_type=jnp.float32)
    attw_ref[0] = w_acc * (1.0 / H)             # PyTorch average_attn_weights=True
    attn_out = attn_out + bo_ref[0]

    def layernorm(y, g, b):
        mu = jnp.mean(y, axis=-1, keepdims=True)
        var = jnp.mean((y - mu) ** 2, axis=-1, keepdims=True)
        return (y - mu) * lax.rsqrt(var + 1e-6) * g + b

    out1 = layernorm(attn_out + x, g1_ref[0], beta1_ref[0])

    h1 = jnp.dot(out1.astype(jnp.bfloat16), wpre_ref[0],
                 preferred_element_type=jnp.float32) + bpre_ref[0]
    h1 = jnp.maximum(h1, 0.0)
    ffn = jnp.dot(h1.astype(jnp.bfloat16), wsuf_ref[0],
                  preferred_element_type=jnp.float32) + bsuf_ref[0]

    # Carry to next layer (stays in VMEM; written back to HBM at the end).
    out_ref[...] = layernorm(out1 + ffn, g2_ref[0], beta2_ref[0])


# ----------------------------------------------------------------------------
# VMEM budget estimate (explicit scoped-VMEM request).
# ----------------------------------------------------------------------------
def _vmem_limit_bytes(batch_blk, seq_len, d_model, num_heads):
    f32, bf16 = 4, 2
    dh = d_model // num_heads
    dff = d_model // 2
    M = batch_blk * seq_len
    act = 3 * M * d_model * f32                                     # x, carry, residuals
    qkv = M * 3 * d_model * f32 + 3 * num_heads * M * dh * bf16
    scores = 3 * num_heads * batch_blk * seq_len * seq_len * f32    # s, e, p
    weights = 2 * ((3 * d_model * d_model + d_model * d_model
                    + d_model * dff + dff * d_model) * bf16
                   + (3 * d_model + d_model + dff + 5 * d_model) * f32)
    attw = 2 * batch_blk * seq_len * seq_len * f32
    est = act + qkv + scores + weights + attw + (8 << 20)
    return int(min(max(est, 32 << 20), 64 << 20))                   # v7x physical cap


# ----------------------------------------------------------------------------
# Wrapper: one pallas_call over the whole stack.
# ----------------------------------------------------------------------------
def encoder_pallas(x2d, causal_bias, stacked, *, num_layers, num_heads,
                   batch, seq_len, d_model, batch_blocks=1):
    L, B, S, D, H = num_layers, batch, seq_len, d_model, num_heads
    NB = batch_blocks
    assert B % NB == 0
    Bblk = B // NB

    names = ["wqkv", "bqkv", "wo", "bo", "wpre", "bpre", "wsuf", "bsuf",
             "g1", "beta1", "g2", "beta2"]
    arrs = [stacked[n] for n in names]

    def layer_spec(a):
        nd = a.ndim
        blk = (1,) + a.shape[1:]
        return pl.BlockSpec(blk, lambda bb, l, _nd=nd: (l,) + (0,) * (_nd - 1))

    in_specs = [pl.BlockSpec((Bblk * S, D), lambda bb, l: (bb, 0)),   # activation
                pl.BlockSpec((S, S), lambda bb, l: (0, 0))] + \
               [layer_spec(a) for a in arrs]                          # per-layer params
    out_specs = [pl.BlockSpec((Bblk * S, D), lambda bb, l: (bb, 0)),  # carry / result
                 pl.BlockSpec((1, Bblk, S, S), lambda bb, l: (l, bb, 0, 0))]

    kernel = functools.partial(encoder_stack_kernel, num_heads=H,
                               batch_blk=Bblk, seq_len=S, d_model=D)

    out2d, attw = pl.pallas_call(
        kernel,
        grid=(NB, L),
        in_specs=in_specs,
        out_specs=out_specs,
        out_shape=(jax.ShapeDtypeStruct((B * S, D), jnp.float32),
                   jax.ShapeDtypeStruct((L, B, S, S), jnp.float32)),
        compiler_params=pltpu.CompilerParams(
            dimension_semantics=("parallel", "arbitrary"),
            vmem_limit_bytes=_vmem_limit_bytes(Bblk, S, D, H)),
    )(x2d, causal_bias, *arrs)
    return out2d, attw


# ----------------------------------------------------------------------------
# Parameter construction (deterministic, synthetic) + layout preparation.
# ----------------------------------------------------------------------------
def make_pos_embedding(d_model, max_seq):
    pe = np.array([[[math.sin(pos * math.exp(-math.log(10000) * i / d_model)
                              * math.exp(math.log(10000) / d_model * (i % 2))
                              + 0.5 * math.pi * (i % 2))
                     for i in range(d_model)]
                    for pos in range(max_seq)]])
    return jnp.asarray(pe, dtype=jnp.float32)        # (1, max_seq, d_model)


def make_causal_bias(seq_len):
    idx = jnp.arange(seq_len)
    return jnp.where(idx[None, :] <= idx[:, None], 0.0, -1e30).astype(jnp.float32)


def init_layer_params(key, d_model):
    """PyTorch nn.Linear convention: W[out, in], y = x @ W.T + b."""
    d_half = d_model // 2
    ks = jax.random.split(key, 8)
    std = 0.02
    return {
        "wqkv": jax.random.normal(ks[0], (3 * d_model, d_model), jnp.float32) * std,
        "bqkv": jax.random.normal(ks[1], (3 * d_model,), jnp.float32) * std,
        "wo":   jax.random.normal(ks[2], (d_model, d_model), jnp.float32) * std,
        "bo":   jax.random.normal(ks[3], (d_model,), jnp.float32) * std,
        "wpre": jax.random.normal(ks[4], (d_half, d_model), jnp.float32) * std,
        "bpre": jax.random.normal(ks[5], (d_half,), jnp.float32) * std,
        "wsuf": jax.random.normal(ks[6], (d_model, d_half), jnp.float32) * std,
        "bsuf": jax.random.normal(ks[7], (d_model,), jnp.float32) * std,
        "g1":   jnp.ones((d_model,), jnp.float32),
        "beta1": jnp.zeros((d_model,), jnp.float32),
        "g2":   jnp.ones((d_model,), jnp.float32),
        "beta2": jnp.zeros((d_model,), jnp.float32),
    }


def prepare_stacked_params(layer_params, num_heads):
    """Stack per-layer params; pre-transpose matmul weights to [in, out] once,
    cast them to bf16, and reshape the output projection to (H, dh, D) so the
    in-kernel head merge needs no lane-axis concat."""
    L = len(layer_params)

    def stack(name):
        return jnp.stack([p[name] for p in layer_params], axis=0)

    def w_t(name):                                    # (L, out, in) -> (L, in, out)
        return jnp.transpose(stack(name), (0, 2, 1)).astype(jnp.bfloat16)

    def vec(name):                                    # (L, C) -> (L, 1, C)
        return stack(name)[:, None, :].astype(jnp.float32)

    wo_t = w_t("wo")                                  # (L, H*dh, D), head-major rows
    d_model = wo_t.shape[-1]
    dh = d_model // num_heads
    wo_r = wo_t.reshape(L, num_heads, dh, d_model)    # (L, H, dh, D)

    return {
        "wqkv": w_t("wqkv"), "bqkv": vec("bqkv"),
        "wo": wo_r, "bo": vec("bo"),
        "wpre": w_t("wpre"), "bpre": vec("bpre"),
        "wsuf": w_t("wsuf"), "bsuf": vec("bsuf"),
        "g1": vec("g1"), "beta1": vec("beta1"),
        "g2": vec("g2"), "beta2": vec("beta2"),
    }


def encoder_forward(tokens, embedding_table, pos_emb, causal_bias, stacked,
                    num_layers, num_heads, d_model, batch_blocks=1):
    B, S = tokens.shape
    # embedding gather + scale + positional add (plain-JAX glue, dropout = id)
    x = embedding_table[tokens] * math.sqrt(d_model) + pos_emb[:, :S, :]
    x2d = x.reshape(B * S, d_model).astype(jnp.float32)

    out2d, attw = encoder_pallas(x2d, causal_bias, stacked,
                                 num_layers=num_layers, num_heads=num_heads,
                                 batch=B, seq_len=S, d_model=d_model,
                                 batch_blocks=batch_blocks)
    out = out2d.reshape(B, S, d_model)
    weights = [attw[l] for l in range(num_layers)]
    return out, weights


# ----------------------------------------------------------------------------
if __name__ == "__main__":
    B, S, D, H = 2, 8, 32, 4
    NUM_LAYERS, VOCAB, MAX_LEN = 2, 50, 16

    key = jax.random.PRNGKey(0)
    k_emb, k_tok, *k_layers = jax.random.split(key, 2 + NUM_LAYERS)

    embedding_table = jax.random.normal(k_emb, (VOCAB, D), jnp.float32)
    pos_emb = make_pos_embedding(D, MAX_LEN)
    causal_bias = make_causal_bias(S)
    layer_params = [init_layer_params(k, D) for k in k_layers]
    stacked = prepare_stacked_params(layer_params, num_heads=H)

    tokens = jax.random.randint(k_tok, (B, S), 0, VOCAB)

    out, weights = encoder_forward(tokens, embedding_table, pos_emb, causal_bias,
                                   stacked, num_layers=NUM_LAYERS, num_heads=H,
                                   d_model=D, batch_blocks=2)
    jax.block_until_ready(out)
    for w in weights:
        jax.block_until_ready(w)

    assert out.shape == (B, S, D)
    assert all(w.shape == (B, S, S) for w in weights)
    assert bool(jnp.all(jnp.isfinite(out)))
    # attention rows must sum to 1 (exact softmax divide)
    assert bool(jnp.all(jnp.abs(jnp.sum(weights[0], axis=-1) - 1.0) < 1e-3))
    print("KERNEL_OK")
</pallas_src>

<mosaic_0001>
module attributes {stable_mosaic.version = 11 : i64} {
  func.func @encoder_stack_kernel(%arg0: i32, %arg1: i32, %arg2: memref<8x32xf32, #tpu.memory_space<vmem>>, %arg3: memref<8x8xf32, #tpu.memory_space<vmem>>, %arg4: memref<1x32x96xbf16, #tpu.memory_space<vmem>>, %arg5: memref<1x1x96xf32, #tpu.memory_space<vmem>>, %arg6: memref<1x4x8x32xbf16, #tpu.memory_space<vmem>>, %arg7: memref<1x1x32xf32, #tpu.memory_space<vmem>>, %arg8: memref<1x32x16xbf16, #tpu.memory_space<vmem>>, %arg9: memref<1x1x16xf32, #tpu.memory_space<vmem>>, %arg10: memref<1x16x32xbf16, #tpu.memory_space<vmem>>, %arg11: memref<1x1x32xf32, #tpu.memory_space<vmem>>, %arg12: memref<1x1x32xf32, #tpu.memory_space<vmem>>, %arg13: memref<1x1x32xf32, #tpu.memory_space<vmem>>, %arg14: memref<1x1x32xf32, #tpu.memory_space<vmem>>, %arg15: memref<1x1x32xf32, #tpu.memory_space<vmem>>, %arg16: memref<8x32xf32, #tpu.memory_space<vmem>>, %arg17: memref<1x1x8x8xf32, #tpu.memory_space<vmem>>) attributes {dimension_semantics = [#tpu.dimension_semantics<parallel>, #tpu.dimension_semantics<arbitrary>], iteration_bounds = array<i64: 2, 2>, scalar_prefetch = 0 : i64, scratch_operands = 0 : i64, tpu.core_type = #tpu.core_type<tc>, window_params = [{transform_indices = @transform_0, window_bounds = array<i64: 8, 32>}, {pipeline_mode = #tpu.pipeline_mode<synchronous>, transform_indices = @transform_1, window_bounds = array<i64: 8, 8>}, {transform_indices = @transform_2, window_bounds = array<i64: 1, 32, 96>}, {transform_indices = @transform_3, window_bounds = array<i64: 1, 1, 96>}, {transform_indices = @transform_4, window_bounds = array<i64: 1, 4, 8, 32>}, {transform_indices = @transform_5, window_bounds = array<i64: 1, 1, 32>}, {transform_indices = @transform_6, window_bounds = array<i64: 1, 32, 16>}, {transform_indices = @transform_7, window_bounds = array<i64: 1, 1, 16>}, {transform_indices = @transform_8, window_bounds = array<i64: 1, 16, 32>}, {transform_indices = @transform_9, window_bounds = array<i64: 1, 1, 32>}, {transform_indices = @transform_10, window_bounds = array<i64: 1, 1, 32>}, {transform_indices = @transform_11, window_bounds = array<i64: 1, 1, 32>}, {transform_indices = @transform_12, window_bounds = array<i64: 1, 1, 32>}, {transform_indices = @transform_13, window_bounds = array<i64: 1, 1, 32>}, {transform_indices = @transform_14, window_bounds = array<i64: 8, 32>}, {transform_indices = @transform_15, window_bounds = array<i64: 1, 1, 8, 8>}]} {
    %c0_i32 = arith.constant 0 : i32
    %0 = arith.cmpi eq, %arg1, %c0_i32 : i32
    %1 = arith.extui %0 : i1 to i32
    %c0_i32_0 = arith.constant 0 : i32
    %2 = arith.cmpi ne, %1, %c0_i32_0 : i32
    scf.if %2 {
      %c0_84 = arith.constant 0 : index
      %c0_85 = arith.constant 0 : index
      %186 = vector.load %arg2[%c0_84, %c0_85] : memref<8x32xf32, #tpu.memory_space<vmem>>, vector<8x32xf32>
      %c0_86 = arith.constant 0 : index
      %c0_87 = arith.constant 0 : index
      %187 = vector.load %arg16[%c0_86, %c0_87] : memref<8x32xf32, #tpu.memory_space<vmem>>, vector<8x32xf32>
      tpu.vector_store %arg16[%c0_86, %c0_87], %186 {strides = array<i32>} : memref<8x32xf32, #tpu.memory_space<vmem>>, vector<8x32xf32>,
    } else {
    }
    %c0 = arith.constant 0 : index
    %c0_1 = arith.constant 0 : index
    %3 = vector.load %arg16[%c0, %c0_1] : memref<8x32xf32, #tpu.memory_space<vmem>>, vector<8x32xf32>
    %4 = arith.truncf %3 : vector<8x32xf32> to vector<8x32xbf16>
    %c0_2 = arith.constant 0 : index
    %c0_3 = arith.constant 0 : index
    %c0_4 = arith.constant 0 : index
    %5 = vector.load %arg4[%c0_2, %c0_3, %c0_4] : memref<1x32x96xbf16, #tpu.memory_space<vmem>>, vector<1x32x96xbf16>
    %6 = vector.shape_cast %5 : vector<1x32x96xbf16> to vector<32x96xbf16>
    %cst = arith.constant dense<0.000000e+00> : vector<8x96xf32>
    %7 = tpu.matmul %4, %6, %cst {dimension_numbers = #tpu.dot_dimension_numbers<[1], [0], [0], [1], [0, 0, 1, 1], [], []>} : vector<8x32xbf16>, vector<32x96xbf16>, vector<8x96xf32> -> vector<8x96xf32>
    %c0_5 = arith.constant 0 : index
    %c0_6 = arith.constant 0 : index
    %c0_7 = arith.constant 0 : index
    %8 = vector.load %arg5[%c0_5, %c0_6, %c0_7] : memref<1x1x96xf32, #tpu.memory_space<vmem>>, vector<1x1x96xf32>
    %9 = vector.shape_cast %8 : vector<1x1x96xf32> to vector<1x96xf32>
    %10 = vector.broadcast %9 : vector<1x96xf32> to vector<8x96xf32>
    %11 = arith.addf %7, %10 : vector<8x96xf32>
    %12 = vector.extract_strided_slice %11 {offsets = [0, 0], sizes = [8, 8], strides = [1, 1]} : vector<8x96xf32> to vector<8x8xf32>
    %cst_8 = arith.constant 0.353553385 : f32
    %13 = vector.broadcast %cst_8 : f32 to vector<8x8xf32>
    %14 = arith.mulf %12, %13 : vector<8x8xf32>
    %15 = vector.shape_cast %14 : vector<8x8xf32> to vector<1x8x8xf32>
    %16 = vector.extract_strided_slice %11 {offsets = [0, 8], sizes = [8, 8], strides = [1, 1]} : vector<8x96xf32> to vector<8x8xf32>
    %cst_9 = arith.constant 0.353553385 : f32
    %17 = vector.broadcast %cst_9 : f32 to vector<8x8xf32>
    %18 = arith.mulf %16, %17 : vector<8x8xf32>
    %19 = vector.shape_cast %18 : vector<8x8xf32> to vector<1x8x8xf32>
    %20 = vector.extract_strided_slice %11 {offsets = [0, 16], sizes = [8, 8], strides = [1, 1]} : vector<8x96xf32> to vector<8x8xf32>
    %cst_10 = arith.constant 0.353553385 : f32
    %21 = vector.broadcast %cst_10 : f32 to vector<8x8xf32>
    %22 = arith.mulf %20, %21 : vector<8x8xf32>
    %23 = vector.shape_cast %22 : vector<8x8xf32> to vector<1x8x8xf32>
    %24 = vector.extract_strided_slice %11 {offsets = [0, 24], sizes = [8, 8], strides = [1, 1]} : vector<8x96xf32> to vector<8x8xf32>
    %cst_11 = arith.constant 0.353553385 : f32
    %25 = vector.broadcast %cst_11 : f32 to vector<8x8xf32>
    %26 = arith.mulf %24, %25 : vector<8x8xf32>
    %27 = vector.shape_cast %26 : vector<8x8xf32> to vector<1x8x8xf32>
    %28 = tpu.concatenate %15, %19, %23, %27 in 0 : vector<1x8x8xf32>, vector<1x8x8xf32>, vector<1x8x8xf32>, vector<1x8x8xf32> -> vector<4x8x8xf32>
    %29 = arith.truncf %28 : vector<4x8x8xf32> to vector<4x8x8xbf16>
    %30 = vector.extract_strided_slice %11 {offsets = [0, 32], sizes = [8, 8], strides = [1, 1]} : vector<8x96xf32> to vector<8x8xf32>
    %31 = vector.shape_cast %30 : vector<8x8xf32> to vector<1x8x8xf32>
    %32 = vector.extract_strided_slice %11 {offsets = [0, 40], sizes = [8, 8], strides = [1, 1]} : vector<8x96xf32> to vector<8x8xf32>
    %33 = vector.shape_cast %32 : vector<8x8xf32> to vector<1x8x8xf32>
    %34 = vector.extract_strided_slice %11 {offsets = [0, 48], sizes = [8, 8], strides = [1, 1]} : vector<8x96xf32> to vector<8x8xf32>
    %35 = vector.shape_cast %34 : vector<8x8xf32> to vector<1x8x8xf32>
    %36 = vector.extract_strided_slice %11 {offsets = [0, 56], sizes = [8, 8], strides = [1, 1]} : vector<8x96xf32> to vector<8x8xf32>
    %37 = vector.shape_cast %36 : vector<8x8xf32> to vector<1x8x8xf32>
    %38 = tpu.concatenate %31, %33, %35, %37 in 0 : vector<1x8x8xf32>, vector<1x8x8xf32>, vector<1x8x8xf32>, vector<1x8x8xf32> -> vector<4x8x8xf32>
    %39 = arith.truncf %38 : vector<4x8x8xf32> to vector<4x8x8xbf16>
    %40 = vector.extract_strided_slice %11 {offsets = [0, 64], sizes = [8, 8], strides = [1, 1]} : vector<8x96xf32> to vector<8x8xf32>
    %41 = vector.shape_cast %40 : vector<8x8xf32> to vector<1x8x8xf32>
    %42 = vector.extract_strided_slice %11 {offsets = [0, 72], sizes = [8, 8], strides = [1, 1]} : vector<8x96xf32> to vector<8x8xf32>
    %43 = vector.shape_cast %42 : vector<8x8xf32> to vector<1x8x8xf32>
    %44 = vector.extract_strided_slice %11 {offsets = [0, 80], sizes = [8, 8], strides = [1, 1]} : vector<8x96xf32> to vector<8x8xf32>
    %45 = vector.shape_cast %44 : vector<8x8xf32> to vector<1x8x8xf32>
    %46 = vector.extract_strided_slice %11 {offsets = [0, 88], sizes = [8, 8], strides = [1, 1]} : vector<8x96xf32> to vector<8x8xf32>
    %47 = vector.shape_cast %46 : vector<8x8xf32> to vector<1x8x8xf32>
    %48 = tpu.concatenate %41, %43, %45, %47 in 0 : vector<1x8x8xf32>, vector<1x8x8xf32>, vector<1x8x8xf32>, vector<1x8x8xf32> -> vector<4x8x8xf32>
    %49 = arith.truncf %48 : vector<4x8x8xf32> to vector<4x8x8xbf16>
    "tpu.trace_start"() <{level = 10 : i32, message = "nqd,nkd->nqk"}> : () -> ()
    %cst_12 = arith.constant dense<0.000000e+00> : vector<4x8x8xf32>
    %50 = tpu.matmul %29, %39, %cst_12 {dimension_numbers = #tpu.dot_dimension_numbers<[2], [2], [1], [1], [0, 0, 0, 1, 1, 1], [0], [0]>} : vector<4x8x8xbf16>, vector<4x8x8xbf16>, vector<4x8x8xf32> -> vector<4x8x8xf32>
    "tpu.trace_stop"() : () -> ()
    %c0_13 = arith.constant 0 : index
    %c0_14 = arith.constant 0 : index
    %51 = vector.load %arg3[%c0_13, %c0_14] : memref<8x8xf32, #tpu.memory_space<vmem>>, vector<8x8xf32>
    %52 = vector.shape_cast %51 : vector<8x8xf32> to vector<1x8x8xf32>
    %53 = vector.broadcast %52 : vector<1x8x8xf32> to vector<4x8x8xf32>
    %54 = arith.addf %50, %53 : vector<4x8x8xf32>
    %cst_15 = arith.constant dense<0xFF800000> : vector<4x8xf32>
    %55 = vector.multi_reduction <maximumf>, %54, %cst_15 [2] : vector<4x8x8xf32> to vector<4x8xf32>
    %56 = vector.shape_cast %55 : vector<4x8xf32> to vector<4x8x1xf32>
    %57 = vector.broadcast %56 : vector<4x8x1xf32> to vector<4x8x8xf32>
    %58 = arith.subf %54, %57 : vector<4x8x8xf32>
    %59 = math.exp %58 : vector<4x8x8xf32>
    %cst_16 = arith.constant dense<0.000000e+00> : vector<4x8xf32>
    %60 = vector.multi_reduction <add>, %59, %cst_16 [2] : vector<4x8x8xf32> to vector<4x8xf32>
    %61 = vector.shape_cast %60 : vector<4x8xf32> to vector<4x8x1xf32>
    %62 = vector.broadcast %61 : vector<4x8x1xf32> to vector<4x8x8xf32>
    %63 = arith.divf %59, %62 : vector<4x8x8xf32>
    %64 = arith.truncf %63 : vector<4x8x8xf32> to vector<4x8x8xbf16>
    "tpu.trace_start"() <{level = 10 : i32, message = "nqk,nkd->nqd"}> : () -> ()
    %cst_17 = arith.constant dense<0.000000e+00> : vector<4x8x8xf32>
    %65 = tpu.matmul %64, %49, %cst_17 {dimension_numbers = #tpu.dot_dimension_numbers<[2], [1], [1], [2], [0, 0, 0, 1, 1, 2], [0], [0]>} : vector<4x8x8xbf16>, vector<4x8x8xbf16>, vector<4x8x8xf32> -> vector<4x8x8xf32>
    %cst_18 = arith.constant 0.000000e+00 : f32
    "tpu.trace_stop"() : () -> ()
    %66 = vector.broadcast %cst_18 : f32 to vector<8x32xf32>
    %cst_19 = arith.constant 0.000000e+00 : f32
    %67 = vector.broadcast %cst_19 : f32 to vector<1x8x8xf32>
    %68 = vector.extract_strided_slice %63 {offsets = [0, 0, 0], sizes = [1, 8, 8], strides = [1, 1, 1]} : vector<4x8x8xf32> to vector<1x8x8xf32>
    %69 = arith.addf %67, %68 : vector<1x8x8xf32>
    %70 = vector.extract_strided_slice %65 {offsets = [0, 0, 0], sizes = [1, 8, 8], strides = [1, 1, 1]} : vector<4x8x8xf32> to vector<1x8x8xf32>
    %71 = vector.shape_cast %70 : vector<1x8x8xf32> to vector<8x8xf32>
    %72 = arith.truncf %71 : vector<8x8xf32> to vector<8x8xbf16>
    %c0_20 = arith.constant 0 : index
    %c0_21 = arith.constant 0 : index
    %c0_22 = arith.constant 0 : index
    %c0_23 = arith.constant 0 : index
    %73 = vector.load %arg6[%c0_20, %c0_21, %c0_22, %c0_23] : memref<1x4x8x32xbf16, #tpu.memory_space<vmem>>, vector<1x1x8x32xbf16>
    %74 = vector.shape_cast %73 : vector<1x1x8x32xbf16> to vector<8x32xbf16>
    %cst_24 = arith.constant dense<0.000000e+00> : vector<8x32xf32>
    %75 = tpu.matmul %72, %74, %cst_24 {dimension_numbers = #tpu.dot_dimension_numbers<[1], [0], [0], [1], [0, 0, 1, 1], [], []>} : vector<8x8xbf16>, vector<8x32xbf16>, vector<8x32xf32> -> vector<8x32xf32>
    %76 = arith.addf %66, %75 : vector<8x32xf32>
    %77 = vector.extract_strided_slice %63 {offsets = [1, 0, 0], sizes = [1, 8, 8], strides = [1, 1, 1]} : vector<4x8x8xf32> to vector<1x8x8xf32>
    %78 = arith.addf %69, %77 : vector<1x8x8xf32>
    %79 = vector.extract_strided_slice %65 {offsets = [1, 0, 0], sizes = [1, 8, 8], strides = [1, 1, 1]} : vector<4x8x8xf32> to vector<1x8x8xf32>
    %80 = vector.shape_cast %79 : vector<1x8x8xf32> to vector<8x8xf32>
    %81 = arith.truncf %80 : vector<8x8xf32> to vector<8x8xbf16>
    %c0_25 = arith.constant 0 : index
    %c1 = arith.constant 1 : index
    %c0_26 = arith.constant 0 : index
    %c0_27 = arith.constant 0 : index
    %82 = vector.load %arg6[%c0_25, %c1, %c0_26, %c0_27] : memref<1x4x8x32xbf16, #tpu.memory_space<vmem>>, vector<1x1x8x32xbf16>
    %83 = vector.shape_cast %82 : vector<1x1x8x32xbf16> to vector<8x32xbf16>
    %cst_28 = arith.constant dense<0.000000e+00> : vector<8x32xf32>
    %84 = tpu.matmul %81, %83, %cst_28 {dimension_numbers = #tpu.dot_dimension_numbers<[1], [0], [0], [1], [0, 0, 1, 1], [], []>} : vector<8x8xbf16>, vector<8x32xbf16>, vector<8x32xf32> -> vector<8x32xf32>
    %85 = arith.addf %76, %84 : vector<8x32xf32>
    %86 = vector.extract_strided_slice %63 {offsets = [2, 0, 0], sizes = [1, 8, 8], strides = [1, 1, 1]} : vector<4x8x8xf32> to vector<1x8x8xf32>
    %87 = arith.addf %78, %86 : vector<1x8x8xf32>
    %88 = vector.extract_strided_slice %65 {offsets = [2, 0, 0], sizes = [1, 8, 8], strides = [1, 1, 1]} : vector<4x8x8xf32> to vector<1x8x8xf32>
    %89 = vector.shape_cast %88 : vector<1x8x8xf32> to vector<8x8xf32>
    %90 = arith.truncf %89 : vector<8x8xf32> to vector<8x8xbf16>
    %c0_29 = arith.constant 0 : index
    %c2 = arith.constant 2 : index
    %c0_30 = arith.constant 0 : index
    %c0_31 = arith.constant 0 : index
    %91 = vector.load %arg6[%c0_29, %c2, %c0_30, %c0_31] : memref<1x4x8x32xbf16, #tpu.memory_space<vmem>>, vector<1x1x8x32xbf16>
    %92 = vector.shape_cast %91 : vector<1x1x8x32xbf16> to vector<8x32xbf16>
    %cst_32 = arith.constant dense<0.000000e+00> : vector<8x32xf32>
    %93 = tpu.matmul %90, %92, %cst_32 {dimension_numbers = #tpu.dot_dimension_numbers<[1], [0], [0], [1], [0, 0, 1, 1], [], []>} : vector<8x8xbf16>, vector<8x32xbf16>, vector<8x32xf32> -> vector<8x32xf32>
    %94 = arith.addf %85, %93 : vector<8x32xf32>
    %95 = vector.extract_strided_slice %63 {offsets = [3, 0, 0], sizes = [1, 8, 8], strides = [1, 1, 1]} : vector<4x8x8xf32> to vector<1x8x8xf32>
    %96 = arith.addf %87, %95 : vector<1x8x8xf32>
    %97 = vector.extract_strided_slice %65 {offsets = [3, 0, 0], sizes = [1, 8, 8], strides = [1, 1, 1]} : vector<4x8x8xf32> to vector<1x8x8xf32>
    %98 = vector.shape_cast %97 : vector<1x8x8xf32> to vector<8x8xf32>
    %99 = arith.truncf %98 : vector<8x8xf32> to vector<8x8xbf16>
    %c0_33 = arith.constant 0 : index
    %c3 = arith.constant 3 : index
    %c0_34 = arith.constant 0 : index
    %c0_35 = arith.constant 0 : index
    %100 = vector.load %arg6[%c0_33, %c3, %c0_34, %c0_35] : memref<1x4x8x32xbf16, #tpu.memory_space<vmem>>, vector<1x1x8x32xbf16>
    %101 = vector.shape_cast %100 : vector<1x1x8x32xbf16> to vector<8x32xbf16>
    %cst_36 = arith.constant dense<0.000000e+00> : vector<8x32xf32>
    %102 = tpu.matmul %99, %101, %cst_36 {dimension_numbers = #tpu.dot_dimension_numbers<[1], [0], [0], [1], [0, 0, 1, 1], [], []>} : vector<8x8xbf16>, vector<8x32xbf16>, vector<8x32xf32> -> vector<8x32xf32>
    %103 = arith.addf %94, %102 : vector<8x32xf32>
    %cst_37 = arith.constant 2.500000e-01 : f32
    %104 = vector.broadcast %cst_37 : f32 to vector<1x8x8xf32>
    %105 = arith.mulf %96, %104 : vector<1x8x8xf32>
    %c0_38 = arith.constant 0 : index
    %c0_39 = arith.constant 0 : index
    %c0_40 = arith.constant 0 : index
    %c0_41 = arith.constant 0 : index
    %106 = vector.load %arg17[%c0_38, %c0_39, %c0_40, %c0_41] : memref<1x1x8x8xf32, #tpu.memory_space<vmem>>, vector<1x1x8x8xf32>
    %107 = vector.shape_cast %106 : vector<1x1x8x8xf32> to vector<1x8x8xf32>
    %108 = vector.shape_cast %105 : vector<1x8x8xf32> to vector<1x1x8x8xf32>
    tpu.vector_store %arg17[%c0_38, %c0_39, %c0_40, %c0_41], %108 {strides = array<i32>} : memref<1x1x8x8xf32, #tpu.memory_space<vmem>>, vector<1x1x8x8xf32>,
    %c0_42 = arith.constant 0 : index
    %c0_43 = arith.constant 0 : index
    %c0_44 = arith.constant 0 : index
    %109 = vector.load %arg7[%c0_42, %c0_43, %c0_44] : memref<1x1x32xf32, #tpu.memory_space<vmem>>, vector<1x1x32xf32>
    %110 = vector.shape_cast %109 : vector<1x1x32xf32> to vector<1x32xf32>
    %111 = vector.broadcast %110 : vector<1x32xf32> to vector<8x32xf32>
    %112 = arith.addf %103, %111 : vector<8x32xf32>
    %113 = arith.addf %112, %3 : vector<8x32xf32>
    %c0_45 = arith.constant 0 : index
    %c0_46 = arith.constant 0 : index
    %c0_47 = arith.constant 0 : index
    %114 = vector.load %arg12[%c0_45, %c0_46, %c0_47] : memref<1x1x32xf32, #tpu.memory_space<vmem>>, vector<1x1x32xf32>
    %115 = vector.shape_cast %114 : vector<1x1x32xf32> to vector<1x32xf32>
    %c0_48 = arith.constant 0 : index
    %c0_49 = arith.constant 0 : index
    %c0_50 = arith.constant 0 : index
    %116 = vector.load %arg13[%c0_48, %c0_49, %c0_50] : memref<1x1x32xf32, #tpu.memory_space<vmem>>, vector<1x1x32xf32>
    %117 = vector.shape_cast %116 : vector<1x1x32xf32> to vector<1x32xf32>
    %cst_51 = arith.constant dense<0.000000e+00> : vector<8xf32>
    %118 = vector.multi_reduction <add>, %113, %cst_51 [1] : vector<8x32xf32> to vector<8xf32>
    %119 = vector.shape_cast %118 : vector<8xf32> to vector<8x1xf32>
    %cst_52 = arith.constant 3.200000e+01 : f32
    %120 = vector.broadcast %cst_52 : f32 to vector<8x1xf32>
    %121 = arith.divf %119, %120 : vector<8x1xf32>
    %122 = vector.broadcast %121 : vector<8x1xf32> to vector<8x32xf32>
    %123 = arith.subf %113, %122 : vector<8x32xf32>
    %124 = arith.mulf %123, %123 : vector<8x32xf32>
    %cst_53 = arith.constant dense<0.000000e+00> : vector<8xf32>
    %125 = vector.multi_reduction <add>, %124, %cst_53 [1] : vector<8x32xf32> to vector<8xf32>
    %126 = vector.shape_cast %125 : vector<8xf32> to vector<8x1xf32>
    %cst_54 = arith.constant 3.200000e+01 : f32
    %127 = vector.broadcast %cst_54 : f32 to vector<8x1xf32>
    %128 = arith.divf %126, %127 : vector<8x1xf32>
    %129 = vector.broadcast %121 : vector<8x1xf32> to vector<8x32xf32>
    %130 = arith.subf %113, %129 : vector<8x32xf32>
    %cst_55 = arith.constant 9.99999997E-7 : f32
    %131 = vector.broadcast %cst_55 : f32 to vector<8x1xf32>
    %132 = arith.addf %128, %131 : vector<8x1xf32>
    %133 = math.rsqrt %132 : vector<8x1xf32>
    %134 = vector.broadcast %133 : vector<8x1xf32> to vector<8x32xf32>
    %135 = arith.mulf %130, %134 : vector<8x32xf32>
    %136 = vector.broadcast %115 : vector<1x32xf32> to vector<8x32xf32>
    %137 = arith.mulf %135, %136 : vector<8x32xf32>
    %138 = vector.broadcast %117 : vector<1x32xf32> to vector<8x32xf32>
    %139 = arith.addf %137, %138 : vector<8x32xf32>
    %140 = arith.truncf %139 : vector<8x32xf32> to vector<8x32xbf16>
    %c0_56 = arith.constant 0 : index
    %c0_57 = arith.constant 0 : index
    %c0_58 = arith.constant 0 : index
    %141 = vector.load %arg8[%c0_56, %c0_57, %c0_58] : memref<1x32x16xbf16, #tpu.memory_space<vmem>>, vector<1x32x16xbf16>
    %142 = vector.shape_cast %141 : vector<1x32x16xbf16> to vector<32x16xbf16>
    %cst_59 = arith.constant dense<0.000000e+00> : vector<8x16xf32>
    %143 = tpu.matmul %140, %142, %cst_59 {dimension_numbers = #tpu.dot_dimension_numbers<[1], [0], [0], [1], [0, 0, 1, 1], [], []>} : vector<8x32xbf16>, vector<32x16xbf16>, vector<8x16xf32> -> vector<8x16xf32>
    %c0_60 = arith.constant 0 : index
    %c0_61 = arith.constant 0 : index
    %c0_62 = arith.constant 0 : index
    %144 = vector.load %arg9[%c0_60, %c0_61, %c0_62] : memref<1x1x16xf32, #tpu.memory_space<vmem>>, vector<1x1x16xf32>
    %145 = vector.shape_cast %144 : vector<1x1x16xf32> to vector<1x16xf32>
    %146 = vector.broadcast %145 : vector<1x16xf32> to vector<8x16xf32>
    %147 = arith.addf %143, %146 : vector<8x16xf32>
    %cst_63 = arith.constant 0.000000e+00 : f32
    %148 = vector.broadcast %cst_63 : f32 to vector<8x16xf32>
    %149 = arith.maximumf %147, %148 : vector<8x16xf32>
    %150 = arith.truncf %149 : vector<8x16xf32> to vector<8x16xbf16>
    %c0_64 = arith.constant 0 : index
    %c0_65 = arith.constant 0 : index
    %c0_66 = arith.constant 0 : index
    %151 = vector.load %arg10[%c0_64, %c0_65, %c0_66] : memref<1x16x32xbf16, #tpu.memory_space<vmem>>, vector<1x16x32xbf16>
    %152 = vector.shape_cast %151 : vector<1x16x32xbf16> to vector<16x32xbf16>
    %cst_67 = arith.constant dense<0.000000e+00> : vector<8x32xf32>
    %153 = tpu.matmul %150, %152, %cst_67 {dimension_numbers = #tpu.dot_dimension_numbers<[1], [0], [0], [1], [0, 0, 1, 1], [], []>} : vector<8x16xbf16>, vector<16x32xbf16>, vector<8x32xf32> -> vector<8x32xf32>
    %c0_68 = arith.constant 0 : index
    %c0_69 = arith.constant 0 : index
    %c0_70 = arith.constant 0 : index
    %154 = vector.load %arg11[%c0_68, %c0_69, %c0_70] : memref<1x1x32xf32, #tpu.memory_space<vmem>>, vector<1x1x32xf32>
    %155 = vector.shape_cast %154 : vector<1x1x32xf32> to vector<1x32xf32>
    %156 = vector.broadcast %155 : vector<1x32xf32> to vector<8x32xf32>
    %157 = arith.addf %153, %156 : vector<8x32xf32>
    %158 = arith.addf %139, %157 : vector<8x32xf32>
    %c0_71 = arith.constant 0 : index
    %c0_72 = arith.constant 0 : index
    %c0_73 = arith.constant 0 : index
    %159 = vector.load %arg14[%c0_71, %c0_72, %c0_73] : memref<1x1x32xf32, #tpu.memory_space<vmem>>, vector<1x1x32xf32>
    %160 = vector.shape_cast %159 : vector<1x1x32xf32> to vector<1x32xf32>
    %c0_74 = arith.constant 0 : index
    %c0_75 = arith.constant 0 : index
    %c0_76 = arith.constant 0 : index
    %161 = vector.load %arg15[%c0_74, %c0_75, %c0_76] : memref<1x1x32xf32, #tpu.memory_space<vmem>>, vector<1x1x32xf32>
    %162 = vector.shape_cast %161 : vector<1x1x32xf32> to vector<1x32xf32>
    %cst_77 = arith.constant dense<0.000000e+00> : vector<8xf32>
    %163 = vector.multi_reduction <add>, %158, %cst_77 [1] : vector<8x32xf32> to vector<8xf32>
    %164 = vector.shape_cast %163 : vector<8xf32> to vector<8x1xf32>
    %cst_78 = arith.constant 3.200000e+01 : f32
    %165 = vector.broadcast %cst_78 : f32 to vector<8x1xf32>
    %166 = arith.divf %164, %165 : vector<8x1xf32>
    %167 = vector.broadcast %166 : vector<8x1xf32> to vector<8x32xf32>
    %168 = arith.subf %158, %167 : vector<8x32xf32>
    %169 = arith.mulf %168, %168 : vector<8x32xf32>
    %cst_79 = arith.constant dense<0.000000e+00> : vector<8xf32>
    %170 = vector.multi_reduction <add>, %169, %cst_79 [1] : vector<8x32xf32> to vector<8xf32>
    %171 = vector.shape_cast %170 : vector<8xf32> to vector<8x1xf32>
    %cst_80 = arith.constant 3.200000e+01 : f32
    %172 = vector.broadcast %cst_80 : f32 to vector<8x1xf32>
    %173 = arith.divf %171, %172 : vector<8x1xf32>
    %174 = vector.broadcast %166 : vector<8x1xf32> to vector<8x32xf32>
    %175 = arith.subf %158, %174 : vector<8x32xf32>
    %cst_81 = arith.constant 9.99999997E-7 : f32
    %176 = vector.broadcast %cst_81 : f32 to vector<8x1xf32>
    %177 = arith.addf %173, %176 : vector<8x1xf32>
    %178 = math.rsqrt %177 : vector<8x1xf32>
    %179 = vector.broadcast %178 : vector<8x1xf32> to vector<8x32xf32>
    %180 = arith.mulf %175, %179 : vector<8x32xf32>
    %181 = vector.broadcast %160 : vector<1x32xf32> to vector<8x32xf32>
    %182 = arith.mulf %180, %181 : vector<8x32xf32>
    %183 = vector.broadcast %162 : vector<1x32xf32> to vector<8x32xf32>
    %184 = arith.addf %182, %183 : vector<8x32xf32>
    %c0_82 = arith.constant 0 : index
    %c0_83 = arith.constant 0 : index
    %185 = vector.load %arg16[%c0_82, %c0_83] : memref<8x32xf32, #tpu.memory_space<vmem>>, vector<8x32xf32>
    tpu.vector_store %arg16[%c0_82, %c0_83], %184 {strides = array<i32>} : memref<8x32xf32, #tpu.memory_space<vmem>>, vector<8x32xf32>,
    return
  }
  func.func @transform_0(%arg0: i32, %arg1: i32) -> (i32, i32) {
    %c0_i32 = arith.constant 0 : i32
    %c0_i32_0 = arith.constant 0 : i32
    return %arg0, %c0_i32 : i32, i32
  }
  func.func @transform_1(%arg0: i32, %arg1: i32) -> (i32, i32) {
    %c0_i32 = arith.constant 0 : i32
    %c0_i32_0 = arith.constant 0 : i32
    %c0_i32_1 = arith.constant 0 : i32
    return %c0_i32, %c0_i32_0 : i32, i32
  }
  func.func @transform_2(%arg0: i32, %arg1: i32) -> (i32, i32, i32) {
    %c0_i32 = arith.constant 0 : i32
    %c0_i32_0 = arith.constant 0 : i32
    %c0_i32_1 = arith.constant 0 : i32
    return %arg1, %c0_i32, %c0_i32_0 : i32, i32, i32
  }
  func.func @transform_3(%arg0: i32, %arg1: i32) -> (i32, i32, i32) {
    %c0_i32 = arith.constant 0 : i32
    %c0_i32_0 = arith.constant 0 : i32
    %c0_i32_1 = arith.constant 0 : i32
    return %arg1, %c0_i32, %c0_i32_0 : i32, i32, i32
  }
  func.func @transform_4(%arg0: i32, %arg1: i32) -> (i32, i32, i32, i32) {
    %c0_i32 = arith.constant 0 : i32
    %c0_i32_0 = arith.constant 0 : i32
    %c0_i32_1 = arith.constant 0 : i32
    %c0_i32_2 = arith.constant 0 : i32
    return %arg1, %c0_i32, %c0_i32_0, %c0_i32_1 : i32, i32, i32, i32
  }
  func.func @transform_5(%arg0: i32, %arg1: i32) -> (i32, i32, i32) {
    %c0_i32 = arith.constant 0 : i32
    %c0_i32_0 = arith.constant 0 : i32
    %c0_i32_1 = arith.constant 0 : i32
    return %arg1, %c0_i32, %c0_i32_0 : i32, i32, i32
  }
  func.func @transform_6(%arg0: i32, %arg1: i32) -> (i32, i32, i32) {
    %c0_i32 = arith.constant 0 : i32
    %c0_i32_0 = arith.constant 0 : i32
    %c0_i32_1 = arith.constant 0 : i32
    return %arg1, %c0_i32, %c0_i32_0 : i32, i32, i32
  }
  func.func @transform_7(%arg0: i32, %arg1: i32) -> (i32, i32, i32) {
    %c0_i32 = arith.constant 0 : i32
    %c0_i32_0 = arith.constant 0 : i32
    %c0_i32_1 = arith.constant 0 : i32
    return %arg1, %c0_i32, %c0_i32_0 : i32, i32, i32
  }
  func.func @transform_8(%arg0: i32, %arg1: i32) -> (i32, i32, i32) {
    %c0_i32 = arith.constant 0 : i32
    %c0_i32_0 = arith.constant 0 : i32
    %c0_i32_1 = arith.constant 0 : i32
    return %arg1, %c0_i32, %c0_i32_0 : i32, i32, i32
  }
  func.func @transform_9(%arg0: i32, %arg1: i32) -> (i32, i32, i32) {
    %c0_i32 = arith.constant 0 : i32
    %c0_i32_0 = arith.constant 0 : i32
    %c0_i32_1 = arith.constant 0 : i32
    return %arg1, %c0_i32, %c0_i32_0 : i32, i32, i32
  }
  func.func @transform_10(%arg0: i32, %arg1: i32) -> (i32, i32, i32) {
    %c0_i32 = arith.constant 0 : i32
    %c0_i32_0 = arith.constant 0 : i32
    %c0_i32_1 = arith.constant 0 : i32
    return %arg1, %c0_i32, %c0_i32_0 : i32, i32, i32
  }
  func.func @transform_11(%arg0: i32, %arg1: i32) -> (i32, i32, i32) {
    %c0_i32 = arith.constant 0 : i32
    %c0_i32_0 = arith.constant 0 : i32
    %c0_i32_1 = arith.constant 0 : i32
    return %arg1, %c0_i32, %c0_i32_0 : i32, i32, i32
  }
  func.func @transform_12(%arg0: i32, %arg1: i32) -> (i32, i32, i32) {
    %c0_i32 = arith.constant 0 : i32
    %c0_i32_0 = arith.constant 0 : i32
    %c0_i32_1 = arith.constant 0 : i32
    return %arg1, %c0_i32, %c0_i32_0 : i32, i32, i32
  }
  func.func @transform_13(%arg0: i32, %arg1: i32) -> (i32, i32, i32) {
    %c0_i32 = arith.constant 0 : i32
    %c0_i32_0 = arith.constant 0 : i32
    %c0_i32_1 = arith.constant 0 : i32
    return %arg1, %c0_i32, %c0_i32_0 : i32, i32, i32
  }
  func.func @transform_14(%arg0: i32, %arg1: i32) -> (i32, i32) {
    %c0_i32 = arith.constant 0 : i32
    %c0_i32_0 = arith.constant 0 : i32
    return %arg0, %c0_i32 : i32, i32
  }
  func.func @transform_15(%arg0: i32, %arg1: i32) -> (i32, i32, i32, i32) {
    %c0_i32 = arith.constant 0 : i32
    %c0_i32_0 = arith.constant 0 : i32
    %c0_i32_1 = arith.constant 0 : i32
    return %arg1, %arg0, %c0_i32, %c0_i32_0 : i32, i32, i32, i32
  }
}

</mosaic_0001>

<llo_original>
// kernel: tpu_custom_call.1
$region0: #{tpu_custom_call.1}
  #allocation0 [shape = 'u32[]', space=smem, size = 0x4, offset = 0x4, fixed_abs, tag = 'smem constant byte address 0x4 - core index']
  #allocation1 [shape = 'u32[144,128]{1,0:T(1,128)}', space=vmem, size = 0x12000, scoped, tag = 'internal scratch']
  %s0 = inlined_call_operand.vmem [shape: f32[16,32], index: 0, kind: input, shape index: {}]
  %s1 = inlined_call_operand.hbm [shape: f32[8,8], index: 1, kind: input, shape index: {}]
  %s2 = inlined_call_operand.vmem [shape: bf16[2,32,96], index: 2, kind: input, shape index: {}]
  %s3 = inlined_call_operand.vmem [shape: f32[2,1,96], index: 3, kind: input, shape index: {}]
  %s4 = inlined_call_operand.hbm [shape: bf16[2,4,8,32], index: 4, kind: input, shape index: {}]
  %s5 = inlined_call_operand.vmem [shape: f32[2,1,32], index: 5, kind: input, shape index: {}]
  %s6 = inlined_call_operand.vmem [shape: bf16[2,32,16], index: 6, kind: input, shape index: {}]
  %s7 = inlined_call_operand.vmem [shape: f32[2,1,16], index: 7, kind: input, shape index: {}]
  %s8 = inlined_call_operand.hbm [shape: bf16[2,16,32], index: 8, kind: input, shape index: {}]
  %s9 = inlined_call_operand.vmem [shape: f32[2,1,32], index: 9, kind: input, shape index: {}]
  %s10 = inlined_call_operand.vmem [shape: f32[2,1,32], index: 10, kind: input, shape index: {}]
  %s11 = inlined_call_operand.vmem [shape: f32[2,1,32], index: 11, kind: input, shape index: {}]
  %s12 = inlined_call_operand.vmem [shape: f32[2,1,32], index: 12, kind: input, shape index: {}]
  %s13 = inlined_call_operand.vmem [shape: f32[2,1,32], index: 13, kind: input, shape index: {}]
  %s14 = inlined_call_operand.hbm [shape: f32[16,32], index: 14, kind: output, shape index: {0}]
  %s15 = inlined_call_operand.hbm [shape: f32[2,2,8,8], index: 15, kind: output, shape index: {1}]
  %16 = xla_tuple %s14, %s15
  %s17 = sld [smem:[#allocation0]]
  $region113: #{tpu_custom_call.1} parent=0
    _
  %s19 = ssub.s32 1, %s17
  %s20 = scalar_select 0, %s19, %s17
  $region1: #{tpu_custom_call.1} parent=0
    #allocation2 [shape = 'u8[4096]{0}', space=vmem, size = 0x1000, scoped, tag = 'input window, operand 1, single buffered']
    #allocation3 [shape = 's32[2]{0}', space=sflag, size = 0x8, scoped, tag = 'scoped memory for tpu_custom_call.1']
    #allocation4 [shape = 's32[2]{0}', space=sflag, size = 0x8, scoped, tag = 'scoped memory for tpu_custom_call.1']
    #allocation5 [shape = 'u8[16384]{0}', space=vmem, size = 0x4000, scoped, tag = 'input window, operand 4']
    #allocation6 [shape = 's32[2]{0}', space=sflag, size = 0x8, scoped, tag = 'scoped memory for tpu_custom_call.1']
    #allocation7 [shape = 'u8[8192]{0}', space=vmem, size = 0x2000, scoped, tag = 'input window, operand 8']
    #allocation8 [shape = 'u8[8192]{0}', space=vmem, size = 0x2000, scoped, tag = 'output window, operand 0']
    #allocation9 [shape = 'u8[8192]{0}', space=vmem, size = 0x2000, scoped, tag = 'output window, operand 1']
    #allocation10 [shape = 's32[2]{0}', space=sflag, size = 0x8, scoped, tag = 'scoped memory for tpu_custom_call.1']
    %21 = vsyncpa [#allocation3], 0
    %22 = vsyncpa [#allocation6], 0
    %s23 = scalar_lea.sflag [#allocation6], 1
    %24 = vsyncpa %s23, 0
    %25 = vsyncpa [#allocation4], 0
    %s26 = scalar_lea.sflag [#allocation4], 1
    %27 = vsyncpa %s26, 0
    %28 = vsyncpa [#allocation10], 0
    %s29 = scalar_lea.sflag [#allocation10], 1
    %30 = vsyncpa %s29, 0
    loop: start=0, step=1, limit=6
    $region2: #{tpu_custom_call.1} parent=1 // loop_pre_header
      _
    $region3: #{tpu_custom_call.1} parent=1 // loop_header
      %s32 = sphi 0, %s36
      %p33 = scmp.ge.s32.totalorder %s32, 6
      %s39 = sphi 0, %s51
      %s40 = sphi 0, %s47
      %s41 = sphi 0, %s39
      %s42 = sphi 0, %s40
      %s43 = sphi 0, %s41
      %s44 = sphi 0, %s42
      %s54 = sphi 0, %s56
      %s57 = sphi 0, %s54
      %s58 = sphi 0, %s57
      %s74 = sphi 0, %s58
      %s78 = sphi 0, %s78
      %s80 = sphi 0, %s78
      %s81 = sphi 0, %s80
      %s95 = sphi 0, %s81
      %s101 = sphi 0, %s103
      %s104 = sphi 0, %s101
      %s105 = sphi 0, %s104
      %s121 = sphi 0, %s105
      %s127 = sphi 0, %s129
      %s130 = sphi 0, %s127
      %s131 = sphi 0, %s130
      %s147 = sphi 0, %s131
      %s153 = sphi 0, %s155
      %s156 = sphi 0, %s153
      %s157 = sphi 0, %s156
      %s173 = sphi 0, %s157
      %s179 = sphi 0, %s181
      %s182 = sphi 0, %s179
      %s183 = sphi 0, %s182
      %s199 = sphi 0, %s183
      %s205 = sphi 0, %s207
      %s208 = sphi 0, %s205
      %s209 = sphi 0, %s208
      %s225 = sphi 0, %s209
      %s231 = sphi 0, %s233
      %s234 = sphi 0, %s231
      %s235 = sphi 0, %s234
      %s251 = sphi 0, %s235
      %s257 = sphi 0, %s259
      %s260 = sphi 0, %s257
      %s261 = sphi 0, %s260
      %s277 = sphi 0, %s261
      %s283 = sphi 0, %s285
      %s286 = sphi 0, %s283
      %s287 = sphi 0, %s286
      %s303 = sphi 0, %s287
      %s309 = sphi 0, %s311
      %s312 = sphi 0, %s309
      %s313 = sphi 0, %s312
      %s329 = sphi 0, %s313
      %s335 = sphi 0, %s337
      %s338 = sphi 0, %s335
      %s339 = sphi 0, %s338
      %s355 = sphi 0, %s339
      %s361 = sphi 0, %s363
      %s364 = sphi 0, %s361
      %s365 = sphi 0, %s364
      %s381 = sphi 0, %s365
      %s387 = sphi 0, %s389
      %s390 = sphi 0, %s387
      %s391 = sphi 0, %s390
      %s407 = sphi 0, %s391
      %s413 = sphi 0, %s415
      %s416 = sphi 0, %s413
      %s417 = sphi 0, %s416
      %s433 = sphi 0, %s417
      %s441 = sphi 0, %s443
      %s444 = sphi 0, %s441
      %s445 = sphi 0, %s444
      %s461 = sphi 0, %s445
    $region4: #{tpu_custom_call.1} parent=1 // loop_header_branch
      %35 = sbr.rel (%p33) target = $region8
    $region5: #{tpu_custom_call.1} parent=1 // loop_body
      %s37 = ssub.s32 %s32, 1
      %s38 = ssub.s32 %s32, 2
      %s45 = sadd.s32 1, %s40
      %p46 = scmp.ge.s32.totalorder %s45, 2
      %s47 = scalar_select %p46, 0, %s45
      %s48 = sadd.s32 1, %s39
      %s49 = scalar_select %p46, %s48, %s39
      %p50 = scmp.ge.s32.totalorder %s49, 2
      %s51 = scalar_select %p50, 0, %s49
      %s52 = ssub.s32 %s39, %s51
      %p53 = scmp.eq.s32.totalorder %s52, 0
      %s55 = sadd.s32 %s54, 1
      %s56 = scalar_select %p53, %s54, %s55
      %p59 = pneg %p53
      %p60 = scmp.eq.s32.totalorder %s32, 3
      %p61 = por %p59, %p60
      %p62 = scmp.ne.s32.totalorder %s54, %s57
      %p63 = scmp.eq.s32.totalorder %s32, 0
      %p64 = por %p62, %p63
      %p65 = scmp.ne.s32.totalorder %s54, %s57
      %p66 = scmp.eq.s32.totalorder %s37, 3
      %p67 = por %p65, %p66
      %p68 = scmp.ne.s32.totalorder %s57, %s58
      %p69 = scmp.eq.s32.totalorder %s37, 0
      %p70 = por %p68, %p69
      %p71 = scmp.ne.s32.totalorder %s57, %s58
      %p72 = scmp.eq.s32.totalorder %s38, 3
      %p73 = por %p71, %p72
      %p75 = scmp.ne.s32.totalorder %s58, %s74
      %p76 = scmp.eq.s32.totalorder %s38, 0
      %p77 = por %p75, %p76
      %s79 = sadd.s32 %s78, 1
      %p82 = scmp.eq.s32.totalorder %s32, 3
      %p83 = scmp.ne.s32.totalorder %s78, %s80
      %p84 = scmp.eq.s32.totalorder %s32, 0
      %p85 = por %p83, %p84
      %p86 = scmp.ne.s32.totalorder %s78, %s80
      %p87 = scmp.eq.s32.totalorder %s37, 3
      %p88 = por %p86, %p87
      %p89 = scmp.ne.s32.totalorder %s80, %s81
      %p90 = scmp.eq.s32.totalorder %s37, 0
      %p91 = por %p89, %p90
      %p92 = scmp.ne.s32.totalorder %s80, %s81
      %p93 = scmp.eq.s32.totalorder %s38, 3
      %p94 = por %p92, %p93
      %p96 = scmp.ne.s32.totalorder %s81, %s95
      %p97 = scmp.eq.s32.totalorder %s38, 0
      %p98 = por %p96, %p97
      %s99 = ssub.s32 %s40, %s47
      %p100 = scmp.eq.s32.totalorder %s99, 0
      %s102 = sadd.s32 %s101, 1
      %s103 = scalar_select %p100, %s101, %s102
      %p106 = pneg %p100
      %p107 = scmp.eq.s32.totalorder %s32, 3
      %p108 = por %p106, %p107
      %p109 = scmp.ne.s32.totalorder %s101, %s104
      %p110 = scmp.eq.s32.totalorder %s32, 0
      %p111 = por %p109, %p110
      %p112 = scmp.ne.s32.totalorder %s101, %s104
      %p113 = scmp.eq.s32.totalorder %s37, 3
      %p114 = por %p112, %p113
      %p115 = scmp.ne.s32.totalorder %s104, %s105
      %p116 = scmp.eq.s32.totalorder %s37, 0
      %p117 = por %p115, %p116
      %p118 = scmp.ne.s32.totalorder %s104, %s105
      %p119 = scmp.eq.s32.totalorder %s38, 3
      %p120 = por %p118, %p119
      %p122 = scmp.ne.s32.totalorder %s105, %s121
      %p123 = scmp.eq.s32.totalorder %s38, 0
      %p124 = por %p122, %p123
      %s125 = ssub.s32 %s40, %s47
      %p126 = scmp.eq.s32.totalorder %s125, 0
      %s128 = sadd.s32 %s127, 1
      %s129 = scalar_select %p126, %s127, %s128
      %p132 = pneg %p126
      %p133 = scmp.eq.s32.totalorder %s32, 3
      %p134 = por %p132, %p133
      %p135 = scmp.ne.s32.totalorder %s127, %s130
      %p136 = scmp.eq.s32.totalorder %s32, 0
      %p137 = por %p135, %p136
      %p138 = scmp.ne.s32.totalorder %s127, %s130
      %p139 = scmp.eq.s32.totalorder %s37, 3
      %p140 = por %p138, %p139
      %p141 = scmp.ne.s32.totalorder %s130, %s131
      %p142 = scmp.eq.s32.totalorder %s37, 0
      %p143 = por %p141, %p142
      %p144 = scmp.ne.s32.totalorder %s130, %s131
      %p145 = scmp.eq.s32.totalorder %s38, 3
      %p146 = por %p144, %p145
      %p148 = scmp.ne.s32.totalorder %s131, %s147
      %p149 = scmp.eq.s32.totalorder %s38, 0
      %p150 = por %p148, %p149
      %s151 = ssub.s32 %s40, %s47
      %p152 = scmp.eq.s32.totalorder %s151, 0
      %s154 = sadd.s32 %s153, 1
      %s155 = scalar_select %p152, %s153, %s154
      %p158 = pneg %p152
      %p159 = scmp.eq.s32.totalorder %s32, 3
      %p160 = por %p158, %p159
      %p161 = scmp.ne.s32.totalorder %s153, %s156
      %p162 = scmp.eq.s32.totalorder %s32, 0
      %p163 = por %p161, %p162
      %p164 = scmp.ne.s32.totalorder %s153, %s156
      %p165 = scmp.eq.s32.totalorder %s37, 3
      %p166 = por %p164, %p165
      %p167 = scmp.ne.s32.totalorder %s156, %s157
      %p168 = scmp.eq.s32.totalorder %s37, 0
      %p169 = por %p167, %p168
      %p170 = scmp.ne.s32.totalorder %s156, %s157
      %p171 = scmp.eq.s32.totalorder %s38, 3
      %p172 = por %p170, %p171
      %p174 = scmp.ne.s32.totalorder %s157, %s173
      %p175 = scmp.eq.s32.totalorder %s38, 0
      %p176 = por %p174, %p175
      %s177 = ssub.s32 %s40, %s47
      %p178 = scmp.eq.s32.totalorder %s177, 0
      %s180 = sadd.s32 %s179, 1
      %s181 = scalar_select %p178, %s179, %s180
      %p184 = pneg %p178
      %p185 = scmp.eq.s32.totalorder %s32, 3
      %p186 = por %p184, %p185
      %p187 = scmp.ne.s32.totalorder %s179, %s182
      %p188 = scmp.eq.s32.totalorder %s32, 0
      %p189 = por %p187, %p188
      %p190 = scmp.ne.s32.totalorder %s179, %s182
      %p191 = scmp.eq.s32.totalorder %s37, 3
      %p192 = por %p190, %p191
      %p193 = scmp.ne.s32.totalorder %s182, %s183
      %p194 = scmp.eq.s32.totalorder %s37, 0
      %p195 = por %p193, %p194
      %p196 = scmp.ne.s32.totalorder %s182, %s183
      %p197 = scmp.eq.s32.totalorder %s38, 3
      %p198 = por %p196, %p197
      %p200 = scmp.ne.s32.totalorder %s183, %s199
      %p201 = scmp.eq.s32.totalorder %s38, 0
      %p202 = por %p200, %p201
      %s203 = ssub.s32 %s40, %s47
      %p204 = scmp.eq.s32.totalorder %s203, 0
      %s206 = sadd.s32 %s205, 1
      %s207 = scalar_select %p204, %s205, %s206
      %p210 = pneg %p204
      %p211 = scmp.eq.s32.totalorder %s32, 3
      %p212 = por %p210, %p211
      %p213 = scmp.ne.s32.totalorder %s205, %s208
      %p214 = scmp.eq.s32.totalorder %s32, 0
      %p215 = por %p213, %p214
      %p216 = scmp.ne.s32.totalorder %s205, %s208
      %p217 = scmp.eq.s32.totalorder %s37, 3
      %p218 = por %p216, %p217
      %p219 = scmp.ne.s32.totalorder %s208, %s209
      %p220 = scmp.eq.s32.totalorder %s37, 0
      %p221 = por %p219, %p220
      %p222 = scmp.ne.s32.totalorder %s208, %s209
      %p223 = scmp.eq.s32.totalorder %s38, 3
      %p224 = por %p222, %p223
      %p226 = scmp.ne.s32.totalorder %s209, %s225
      %p227 = scmp.eq.s32.totalorder %s38, 0
      %p228 = por %p226, %p227
      %s229 = ssub.s32 %s40, %s47
      %p230 = scmp.eq.s32.totalorder %s229, 0
      %s232 = sadd.s32 %s231, 1
      %s233 = scalar_select %p230, %s231, %s232
      %p236 = pneg %p230
      %p237 = scmp.eq.s32.totalorder %s32, 3
      %p238 = por %p236, %p237
      %p239 = scmp.ne.s32.totalorder %s231, %s234
      %p240 = scmp.eq.s32.totalorder %s32, 0
      %p241 = por %p239, %p240
      %p242 = scmp.ne.s32.totalorder %s231, %s234
      %p243 = scmp.eq.s32.totalorder %s37, 3
      %p244 = por %p242, %p243
      %p245 = scmp.ne.s32.totalorder %s234, %s235
      %p246 = scmp.eq.s32.totalorder %s37, 0
      %p247 = por %p245, %p246
      %p248 = scmp.ne.s32.totalorder %s234, %s235
      %p249 = scmp.eq.s32.totalorder %s38, 3
      %p250 = por %p248, %p249
      %p252 = scmp.ne.s32.totalorder %s235, %s251
      %p253 = scmp.eq.s32.totalorder %s38, 0
      %p254 = por %p252, %p253
      %s255 = ssub.s32 %s40, %s47
      %p256 = scmp.eq.s32.totalorder %s255, 0
      %s258 = sadd.s32 %s257, 1
      %s259 = scalar_select %p256, %s257, %s258
      %p262 = pneg %p256
      %p263 = scmp.eq.s32.totalorder %s32, 3
      %p264 = por %p262, %p263
      %p265 = scmp.ne.s32.totalorder %s257, %s260
      %p266 = scmp.eq.s32.totalorder %s32, 0
      %p267 = por %p265, %p266
      %p268 = scmp.ne.s32.totalorder %s257, %s260
      %p269 = scmp.eq.s32.totalorder %s37, 3
      %p270 = por %p268, %p269
      %p271 = scmp.ne.s32.totalorder %s260, %s261
      %p272 = scmp.eq.s32.totalorder %s37, 0
      %p273 = por %p271, %p272
      %p274 = scmp.ne.s32.totalorder %s260, %s261
      %p275 = scmp.eq.s32.totalorder %s38, 3
      %p276 = por %p274, %p275
      %p278 = scmp.ne.s32.totalorder %s261, %s277
      %p279 = scmp.eq.s32.totalorder %s38, 0
      %p280 = por %p278, %p279
      %s281 = ssub.s32 %s40, %s47
      %p282 = scmp.eq.s32.totalorder %s281, 0
      %s284 = sadd.s32 %s283, 1
      %s285 = scalar_select %p282, %s283, %s284
      %p288 = pneg %p282
      %p289 = scmp.eq.s32.totalorder %s32, 3
      %p290 = por %p288, %p289
      %p291 = scmp.ne.s32.totalorder %s283, %s286
      %p292 = scmp.eq.s32.totalorder %s32, 0
      %p293 = por %p291, %p292
      %p294 = scmp.ne.s32.totalorder %s283, %s286
      %p295 = scmp.eq.s32.totalorder %s37, 3
      %p296 = por %p294, %p295
      %p297 = scmp.ne.s32.totalorder %s286, %s287
      %p298 = scmp.eq.s32.totalorder %s37, 0
      %p299 = por %p297, %p298
      %p300 = scmp.ne.s32.totalorder %s286, %s287
      %p301 = scmp.eq.s32.totalorder %s38, 3
      %p302 = por %p300, %p301
      %p304 = scmp.ne.s32.totalorder %s287, %s303
      %p305 = scmp.eq.s32.totalorder %s38, 0
      %p306 = por %p304, %p305
      %s307 = ssub.s32 %s40, %s47
      %p308 = scmp.eq.s32.totalorder %s307, 0
      %s310 = sadd.s32 %s309, 1
      %s311 = scalar_select %p308, %s309, %s310
      %p314 = pneg %p308
      %p315 = scmp.eq.s32.totalorder %s32, 3
      %p316 = por %p314, %p315
      %p317 = scmp.ne.s32.totalorder %s309, %s312
      %p318 = scmp.eq.s32.totalorder %s32, 0
      %p319 = por %p317, %p318
      %p320 = scmp.ne.s32.totalorder %s309, %s312
      %p321 = scmp.eq.s32.totalorder %s37, 3
      %p322 = por %p320, %p321
      %p323 = scmp.ne.s32.totalorder %s312, %s313
      %p324 = scmp.eq.s32.totalorder %s37, 0
      %p325 = por %p323, %p324
      %p326 = scmp.ne.s32.totalorder %s312, %s313
      %p327 = scmp.eq.s32.totalorder %s38, 3
      %p328 = por %p326, %p327
      %p330 = scmp.ne.s32.totalorder %s313, %s329
      %p331 = scmp.eq.s32.totalorder %s38, 0
      %p332 = por %p330, %p331
      %s333 = ssub.s32 %s40, %s47
      %p334 = scmp.eq.s32.totalorder %s333, 0
      %s336 = sadd.s32 %s335, 1
      %s337 = scalar_select %p334, %s335, %s336
      %p340 = pneg %p334
      %p341 = scmp.eq.s32.totalorder %s32, 3
      %p342 = por %p340, %p341
      %p343 = scmp.ne.s32.totalorder %s335, %s338
      %p344 = scmp.eq.s32.totalorder %s32, 0
      %p345 = por %p343, %p344
      %p346 = scmp.ne.s32.totalorder %s335, %s338
      %p347 = scmp.eq.s32.totalorder %s37, 3
      %p348 = por %p346, %p347
      %p349 = scmp.ne.s32.totalorder %s338, %s339
      %p350 = scmp.eq.s32.totalorder %s37, 0
      %p351 = por %p349, %p350
      %p352 = scmp.ne.s32.totalorder %s338, %s339
      %p353 = scmp.eq.s32.totalorder %s38, 3
      %p354 = por %p352, %p353
      %p356 = scmp.ne.s32.totalorder %s339, %s355
      %p357 = scmp.eq.s32.totalorder %s38, 0
      %p358 = por %p356, %p357
      %s359 = ssub.s32 %s40, %s47
      %p360 = scmp.eq.s32.totalorder %s359, 0
      %s362 = sadd.s32 %s361, 1
      %s363 = scalar_select %p360, %s361, %s362
      %p366 = pneg %p360
      %p367 = scmp.eq.s32.totalorder %s32, 3
      %p368 = por %p366, %p367
      %p369 = scmp.ne.s32.totalorder %s361, %s364
      %p370 = scmp.eq.s32.totalorder %s32, 0
      %p371 = por %p369, %p370
      %p372 = scmp.ne.s32.totalorder %s361, %s364
      %p373 = scmp.eq.s32.totalorder %s37, 3
      %p374 = por %p372, %p373
      %p375 = scmp.ne.s32.totalorder %s364, %s365
      %p376 = scmp.eq.s32.totalorder %s37, 0
      %p377 = por %p375, %p376
      %p378 = scmp.ne.s32.totalorder %s364, %s365
      %p379 = scmp.eq.s32.totalorder %s38, 3
      %p380 = por %p378, %p379
      %p382 = scmp.ne.s32.totalorder %s365, %s381
      %p383 = scmp.eq.s32.totalorder %s38, 0
      %p384 = por %p382, %p383
      %s385 = ssub.s32 %s40, %s47
      %p386 = scmp.eq.s32.totalorder %s385, 0
      %s388 = sadd.s32 %s387, 1
      %s389 = scalar_select %p386, %s387, %s388
      %p392 = pneg %p386
      %p393 = scmp.eq.s32.totalorder %s32, 3
      %p394 = por %p392, %p393
      %p395 = scmp.ne.s32.totalorder %s387, %s390
      %p396 = scmp.eq.s32.totalorder %s32, 0
      %p397 = por %p395, %p396
      %p398 = scmp.ne.s32.totalorder %s387, %s390
      %p399 = scmp.eq.s32.totalorder %s37, 3
      %p400 = por %p398, %p399
      %p401 = scmp.ne.s32.totalorder %s390, %s391
      %p402 = scmp.eq.s32.totalorder %s37, 0
      %p403 = por %p401, %p402
      %p404 = scmp.ne.s32.totalorder %s390, %s391
      %p405 = scmp.eq.s32.totalorder %s38, 3
      %p406 = por %p404, %p405
      %p408 = scmp.ne.s32.totalorder %s391, %s407
      %p409 = scmp.eq.s32.totalorder %s38, 0
      %p410 = por %p408, %p409
      %s411 = ssub.s32 %s39, %s51
      %p412 = scmp.eq.s32.totalorder %s411, 0
      %s414 = sadd.s32 %s413, 1
      %s415 = scalar_select %p412, %s413, %s414
      %p418 = pneg %p412
      %p419 = scmp.eq.s32.totalorder %s32, 3
      %p420 = por %p418, %p419
      %p421 = scmp.ne.s32.totalorder %s413, %s416
      %p422 = scmp.eq.s32.totalorder %s32, 0
      %p423 = por %p421, %p422
      %p424 = scmp.ne.s32.totalorder %s413, %s416
      %p425 = scmp.eq.s32.totalorder %s37, 3
      %p426 = por %p424, %p425
      %p427 = scmp.ne.s32.totalorder %s416, %s417
      %p428 = scmp.eq.s32.totalorder %s37, 0
      %p429 = por %p427, %p428
      %p430 = scmp.ne.s32.totalorder %s416, %s417
      %p431 = scmp.eq.s32.totalorder %s38, 3
      %p432 = por %p430, %p431
      %p434 = scmp.ne.s32.totalorder %s417, %s433
      %p435 = scmp.eq.s32.totalorder %s38, 0
      %p436 = por %p434, %p435
      %s437 = ssub.s32 %s40, %s47
      %s438 = ssub.s32 %s39, %s51
      %s439 = sor.u32 %s437, %s438
      %p440 = scmp.eq.s32.totalorder %s439, 0
      %s442 = sadd.s32 %s441, 1
      %s443 = scalar_select %p440, %s441, %s442
      %p446 = pneg %p440
      %p447 = scmp.eq.s32.totalorder %s32, 3
      %p448 = por %p446, %p447
      %p449 = scmp.ne.s32.totalorder %s441, %s444
      %p450 = scmp.eq.s32.totalorder %s32, 0
      %p451 = por %p449, %p450
      %p452 = scmp.ne.s32.totalorder %s441, %s444
      %p453 = scmp.eq.s32.totalorder %s37, 3
      %p454 = por %p452, %p453
      %p455 = scmp.ne.s32.totalorder %s444, %s445
      %p456 = scmp.eq.s32.totalorder %s37, 0
      %p457 = por %p455, %p456
      %p458 = scmp.ne.s32.totalorder %s444, %s445
      %p459 = scmp.eq.s32.totalorder %s38, 3
      %p460 = por %p458, %p459
      %p462 = scmp.ne.s32.totalorder %s445, %s461
      %p463 = scmp.eq.s32.totalorder %s38, 0
      %p464 = por %p462, %p463
      %p465 = scmp.le.s32.totalorder 1, %s32
      %p466 = scmp.lt.s32.totalorder %s32, 5
      %p467 = pnand %p465, %p466
      %p468 = pneg %p467
      // Predicated region
      $region9: #{tpu_custom_call.1} parent=5 // pred_check
        _
      $region10: #{tpu_custom_call.1} parent=5 // pred_check_branch
        %470 = sbr.rel (%p467) target = $region12
      $region11: #{tpu_custom_call.1} parent=5 // pred_region
        %s471 = ssub.s32 %s32, 1
        // Predicated region
        $region13: #{tpu_custom_call.1} parent=11 // pred_check
          %p472 = pneg %p91
        $region14: #{tpu_custom_call.1} parent=11 // pred_check_branch
          %474 = sbr.rel (%p472) target = $region16
        $region15: #{tpu_custom_call.1} parent=11 // pred_region
          %s476 = ssub.s32 128, 128
          %477 = vsyncadd [#allocation3], %s476
          %s479 = sshll.u32 [#allocation2], 4
          %s480 = int_to_ptr.vmem [resolvable:$true] %s479
          %482 = dma.hbm_to_vmem [thread:$0]  %s1, 128, %s480, [#allocation3]
        $region16: #{tpu_custom_call.1} parent=11 // pred_fallthru
          _
      $region12: #{tpu_custom_call.1} parent=5 // pred_fallthru
        _
      %p483 = scmp.lt.s32.totalorder %s32, 4
      // Predicated region
      $region17: #{tpu_custom_call.1} parent=5 // pred_check
        %p484 = pneg %p483
      $region18: #{tpu_custom_call.1} parent=5 // pred_check_branch
        %486 = sbr.rel (%p484) target = $region20
      $region19: #{tpu_custom_call.1} parent=5 // pred_region
        // Predicated region
        $region21: #{tpu_custom_call.1} parent=19 // pred_check
          %p487 = pneg %p64
        $region22: #{tpu_custom_call.1} parent=19 // pred_check_branch
          %489 = sbr.rel (%p487) target = $region24
        $region23: #{tpu_custom_call.1} parent=19 // pred_region
          %p490 = scmp.lt.s32.totalorder %s39, 1
          %s491 = scalar_select %p490, %s39, 1
          %s492 = smul.addr %s491, 8
          %s493 = scalar_lea.vmem %s0, %s492
        $region24: #{tpu_custom_call.1} parent=19 // pred_fallthru
          _
        // Predicated region
        $region25: #{tpu_custom_call.1} parent=19 // pred_check
          %p494 = pneg %p111
        $region26: #{tpu_custom_call.1} parent=19 // pred_check_branch
          %496 = sbr.rel (%p494) target = $region28
        $region27: #{tpu_custom_call.1} parent=19 // pred_region
          %p497 = scmp.lt.s32.totalorder %s40, 1
          %s498 = scalar_select %p497, %s40, 1
          %s499 = smul.addr %s498, 4
          %s500 = smul.addr %s499, 4
          %s501 = scalar_lea.vmem %s2, %s500
        $region28: #{tpu_custom_call.1} parent=19 // pred_fallthru
          _
        // Predicated region
        $region29: #{tpu_custom_call.1} parent=19 // pred_check
          %p502 = pneg %p137
        $region30: #{tpu_custom_call.1} parent=19 // pred_check_branch
          %504 = sbr.rel (%p502) target = $region32
        $region31: #{tpu_custom_call.1} parent=19 // pred_region
          %p505 = scmp.lt.s32.totalorder %s40, 1
          %s506 = scalar_select %p505, %s40, 1
          %s507 = scalar_lea.vmem %s3, %s506
        $region32: #{tpu_custom_call.1} parent=19 // pred_fallthru
          _
        // Predicated region
        $region33: #{tpu_custom_call.1} parent=19 // pred_check
          %p508 = pneg %p163
        $region34: #{tpu_custom_call.1} parent=19 // pred_check_branch
          %510 = sbr.rel (%p508) target = $region36
        $region35: #{tpu_custom_call.1} parent=19 // pred_region
          %s511 = sand.u32 %s32, 1
          %s512 = scalar_lea.sflag [#allocation6], %s511
          %s513 = sand.u32 %s153, 1
          %s514 = smul.addr %s513, 16
          %s515 = scalar_lea.vmem [#allocation5], %s514
          %s517 = ssub.s32 256, 256
          %518 = vsyncadd %s512, %s517
          %s519 = smul.addr %s40, 4
          %s520 = smul.addr %s519, 64
          %s521 = scalar_lea.hbm %s4, %s520
          %s522 = sshll.u32 %s515, 4
          %s523 = int_to_ptr.vmem [resolvable:$true] %s522
          %528 = dma.hbm_to_vmem [thread:$0]  %s521, 256, %s523, %s512, 64, 64, 4
        $region36: #{tpu_custom_call.1} parent=19 // pred_fallthru
          _
        // Predicated region
        $region37: #{tpu_custom_call.1} parent=19 // pred_check
          %p529 = pneg %p189
        $region38: #{tpu_custom_call.1} parent=19 // pred_check_branch
          %531 = sbr.rel (%p529) target = $region40
        $region39: #{tpu_custom_call.1} parent=19 // pred_region
          %p532 = scmp.lt.s32.totalorder %s40, 1
          %s533 = scalar_select %p532, %s40, 1
          %s534 = scalar_lea.vmem %s5, %s533
        $region40: #{tpu_custom_call.1} parent=19 // pred_fallthru
          _
        // Predicated region
        $region41: #{tpu_custom_call.1} parent=19 // pred_check
          %p535 = pneg %p215
        $region42: #{tpu_custom_call.1} parent=19 // pred_check_branch
          %537 = sbr.rel (%p535) target = $region44
        $region43: #{tpu_custom_call.1} parent=19 // pred_region
          %p538 = scmp.lt.s32.totalorder %s40, 1
          %s539 = scalar_select %p538, %s40, 1
          %s540 = smul.addr %s539, 4
          %s541 = smul.addr %s540, 4
          %s542 = scalar_lea.vmem %s6, %s541
        $region44: #{tpu_custom_call.1} parent=19 // pred_fallthru
          _
        // Predicated region
        $region45: #{tpu_custom_call.1} parent=19 // pred_check
          %p543 = pneg %p241
        $region46: #{tpu_custom_call.1} parent=19 // pred_check_branch
          %545 = sbr.rel (%p543) target = $region48
        $region47: #{tpu_custom_call.1} parent=19 // pred_region
          %p546 = scmp.lt.s32.totalorder %s40, 1
          %s547 = scalar_select %p546, %s40, 1
          %s548 = scalar_lea.vmem %s7, %s547
        $region48: #{tpu_custom_call.1} parent=19 // pred_fallthru
          _
        // Predicated region
        $region49: #{tpu_custom_call.1} parent=19 // pred_check
          %p549 = pneg %p267
        $region50: #{tpu_custom_call.1} parent=19 // pred_check_branch
          %551 = sbr.rel (%p549) target = $region52
        $region51: #{tpu_custom_call.1} parent=19 // pred_region
          %s552 = sand.u32 %s32, 1
          %s553 = scalar_lea.sflag [#allocation6], %s552
          %s554 = sand.u32 %s257, 1
          %s555 = smul.addr %s554, 8
          %s556 = scalar_lea.vmem [#allocation7], %s555
          %s558 = ssub.s32 128, 128
          %559 = vsyncadd %s553, %s558
          %s560 = smul.addr %s40, 2
          %s561 = smul.addr %s560, 64
          %s562 = scalar_lea.hbm %s8, %s561
          %s563 = sshll.u32 %s556, 4
          %s564 = int_to_ptr.vmem [resolvable:$true] %s563
          %569 = dma.hbm_to_vmem [thread:$0]  %s562, 128, %s564, %s553, 64, 64, 4
        $region52: #{tpu_custom_call.1} parent=19 // pred_fallthru
          _
        // Predicated region
        $region53: #{tpu_custom_call.1} parent=19 // pred_check
          %p570 = pneg %p293
        $region54: #{tpu_custom_call.1} parent=19 // pred_check_branch
          %572 = sbr.rel (%p570) target = $region56
        $region55: #{tpu_custom_call.1} parent=19 // pred_region
          %p573 = scmp.lt.s32.totalorder %s40, 1
          %s574 = scalar_select %p573, %s40, 1
          %s575 = scalar_lea.vmem %s9, %s574
        $region56: #{tpu_custom_call.1} parent=19 // pred_fallthru
          _
        // Predicated region
        $region57: #{tpu_custom_call.1} parent=19 // pred_check
          %p576 = pneg %p319
        $region58: #{tpu_custom_call.1} parent=19 // pred_check_branch
          %578 = sbr.rel (%p576) target = $region60
        $region59: #{tpu_custom_call.1} parent=19 // pred_region
          %p579 = scmp.lt.s32.totalorder %s40, 1
          %s580 = scalar_select %p579, %s40, 1
          %s581 = scalar_lea.vmem %s10, %s580
        $region60: #{tpu_custom_call.1} parent=19 // pred_fallthru
          _
        // Predicated region
        $region61: #{tpu_custom_call.1} parent=19 // pred_check
          %p582 = pneg %p345
        $region62: #{tpu_custom_call.1} parent=19 // pred_check_branch
          %584 = sbr.rel (%p582) target = $region64
        $region63: #{tpu_custom_call.1} parent=19 // pred_region
          %p585 = scmp.lt.s32.totalorder %s40, 1
          %s586 = scalar_select %p585, %s40, 1
          %s587 = scalar_lea.vmem %s11, %s586
        $region64: #{tpu_custom_call.1} parent=19 // pred_fallthru
          _
        // Predicated region
        $region65: #{tpu_custom_call.1} parent=19 // pred_check
          %p588 = pneg %p371
        $region66: #{tpu_custom_call.1} parent=19 // pred_check_branch
          %590 = sbr.rel (%p588) target = $region68
        $region67: #{tpu_custom_call.1} parent=19 // pred_region
          %p591 = scmp.lt.s32.totalorder %s40, 1
          %s592 = scalar_select %p591, %s40, 1
          %s593 = scalar_lea.vmem %s12, %s592
        $region68: #{tpu_custom_call.1} parent=19 // pred_fallthru
          _
        // Predicated region
        $region69: #{tpu_custom_call.1} parent=19 // pred_check
          %p594 = pneg %p397
        $region70: #{tpu_custom_call.1} parent=19 // pred_check_branch
          %596 = sbr.rel (%p594) target = $region72
        $region71: #{tpu_custom_call.1} parent=19 // pred_region
          %p597 = scmp.lt.s32.totalorder %s40, 1
          %s598 = scalar_select %p597, %s40, 1
          %s599 = scalar_lea.vmem %s13, %s598
        $region72: #{tpu_custom_call.1} parent=19 // pred_fallthru
          _
      $region20: #{tpu_custom_call.1} parent=5 // pred_fallthru
        _
      %p600 = scmp.le.s32.totalorder 1, %s32
      %p601 = scmp.lt.s32.totalorder %s32, 5
      %p602 = pnand %p600, %p601
      %p603 = pneg %p602
      // Predicated region
      $region73: #{tpu_custom_call.1} parent=5 // pred_check
        _
      $region74: #{tpu_custom_call.1} parent=5 // pred_check_branch
        %605 = sbr.rel (%p602) target = $region76
      $region75: #{tpu_custom_call.1} parent=5 // pred_region
        %s606 = ssub.s32 %s32, 1
        // Predicated region
        $region77: #{tpu_custom_call.1} parent=75 // pred_check
          %p607 = pneg %p91
        $region78: #{tpu_custom_call.1} parent=75 // pred_check_branch
          %609 = sbr.rel (%p607) target = $region80
        $region79: #{tpu_custom_call.1} parent=75 // pred_region
          %610 = dma.done [#allocation3], 128
        $region80: #{tpu_custom_call.1} parent=75 // pred_fallthru
          _
        %s611 = sand.u32 %s37, 1
        %s612 = scalar_lea.sflag [#allocation6], %s611
        %s613 = sand.u32 %s156, 1
        %s614 = smul.addr %s613, 16
        %s615 = scalar_lea.vmem [#allocation5], %s614
        // Predicated region
        $region81: #{tpu_custom_call.1} parent=75 // pred_check
          %p616 = pneg %p169
        $region82: #{tpu_custom_call.1} parent=75 // pred_check_branch
          %618 = sbr.rel (%p616) target = $region84
        $region83: #{tpu_custom_call.1} parent=75 // pred_region
          %619 = dma.done %s612, 256
        $region84: #{tpu_custom_call.1} parent=75 // pred_fallthru
          _
        %s620 = sand.u32 %s37, 1
        %s621 = scalar_lea.sflag [#allocation6], %s620
        %s622 = sand.u32 %s260, 1
        %s623 = smul.addr %s622, 8
        %s624 = scalar_lea.vmem [#allocation7], %s623
        // Predicated region
        $region85: #{tpu_custom_call.1} parent=75 // pred_check
          %p625 = pneg %p273
        $region86: #{tpu_custom_call.1} parent=75 // pred_check_branch
          %627 = sbr.rel (%p625) target = $region88
        $region87: #{tpu_custom_call.1} parent=75 // pred_region
          %628 = dma.done %s621, 128
        $region88: #{tpu_custom_call.1} parent=75 // pred_fallthru
          _
        %p629 = scmp.lt.s32.totalorder %s41, 1
        %s630 = scalar_select %p629, %s41, 1
        %s631 = smul.addr %s630, 8
        %s632 = scalar_lea.vmem %s0, %s631
        %p633 = pneg %p70
        %p634 = pneg %p67
        %p635 = pneg %p91
        %p636 = pneg %p88
        %p637 = scmp.lt.s32.totalorder %s42, 1
        %s638 = scalar_select %p637, %s42, 1
        %s639 = smul.addr %s638, 4
        %s640 = smul.addr %s639, 4
        %s641 = scalar_lea.vmem %s2, %s640
        %p642 = pneg %p117
        %p643 = pneg %p114
        %p644 = scmp.lt.s32.totalorder %s42, 1
        %s645 = scalar_select %p644, %s42, 1
        %s646 = scalar_lea.vmem %s3, %s645
        %p647 = pneg %p143
        %p648 = pneg %p140
        %s649 = sand.u32 %s37, 1
        %s650 = scalar_lea.sflag [#allocation6], %s649
        %s651 = sand.u32 %s156, 1
        %s652 = smul.addr %s651, 16
        %s653 = scalar_lea.vmem [#allocation5], %s652
        %p654 = pneg %p169
        %p655 = pneg %p166
        %p656 = scmp.lt.s32.totalorder %s42, 1
        %s657 = scalar_select %p656, %s42, 1
        %s658 = scalar_lea.vmem %s5, %s657
        %p659 = pneg %p195
        %p660 = pneg %p192
        %p661 = scmp.lt.s32.totalorder %s42, 1
        %s662 = scalar_select %p661, %s42, 1
        %s663 = smul.addr %s662, 4
        %s664 = smul.addr %s663, 4
        %s665 = scalar_lea.vmem %s6, %s664
        %p666 = pneg %p221
        %p667 = pneg %p218
        %p668 = scmp.lt.s32.totalorder %s42, 1
        %s669 = scalar_select %p668, %s42, 1
        %s670 = scalar_lea.vmem %s7, %s669
        %p671 = pneg %p247
        %p672 = pneg %p244
        %s673 = sand.u32 %s37, 1
        %s674 = scalar_lea.sflag [#allocation6], %s673
        %s675 = sand.u32 %s260, 1
        %s676 = smul.addr %s675, 8
        %s677 = scalar_lea.vmem [#allocation7], %s676
        %p678 = pneg %p273
        %p679 = pneg %p270
        %p680 = scmp.lt.s32.totalorder %s42, 1
        %s681 = scalar_select %p680, %s42, 1
        %s682 = scalar_lea.vmem %s9, %s681
        %p683 = pneg %p299
        %p684 = pneg %p296
        %p685 = scmp.lt.s32.totalorder %s42, 1
        %s686 = scalar_select %p685, %s42, 1
        %s687 = scalar_lea.vmem %s10, %s686
        %p688 = pneg %p325
        %p689 = pneg %p322
        %p690 = scmp.lt.s32.totalorder %s42, 1
        %s691 = scalar_select %p690, %s42, 1
        %s692 = scalar_lea.vmem %s11, %s691
        %p693 = pneg %p351
        %p694 = pneg %p348
        %p695 = scmp.lt.s32.totalorder %s42, 1
        %s696 = scalar_select %p695, %s42, 1
        %s697 = scalar_lea.vmem %s12, %s696
        %p698 = pneg %p377
        %p699 = pneg %p374
        %p700 = scmp.lt.s32.totalorder %s42, 1
        %s701 = scalar_select %p700, %s42, 1
        %s702 = scalar_lea.vmem %s13, %s701
        %p703 = pneg %p403
        %p704 = pneg %p400
        %p705 = pneg %p429
        %p706 = pneg %p426
        %s707 = sand.u32 %s416, 1
        %s708 = scalar_lea.sflag [#allocation4], %s707
        %s709 = sand.u32 %s416, 1
        %s710 = smul.addr %s709, 8
        %s711 = scalar_lea.vmem [#allocation8], %s710
        %p712 = pneg %p457
        %p713 = pneg %p454
        %s714 = sand.u32 %s444, 1
        %s715 = scalar_lea.sflag [#allocation10], %s714
        %s716 = sand.u32 %s444, 1
        %s717 = smul.addr %s716, 8
        %s718 = scalar_lea.vmem [#allocation9], %s717
        %p719 = scmp.lt.s32.totalorder %s41, 1
        %s720 = scalar_select %p719, %s41, 1
        %s721 = smul.addr %s720, 8
        %s722 = scalar_lea.vmem %s0, %s721
        %p723 = scmp.lt.s32.totalorder %s42, 1
        %s724 = scalar_select %p723, %s42, 1
        %s725 = smul.addr %s724, 4
        %s726 = smul.addr %s725, 4
        %s727 = scalar_lea.vmem %s2, %s726
        %p728 = scmp.lt.s32.totalorder %s42, 1
        %s729 = scalar_select %p728, %s42, 1
        %s730 = scalar_lea.vmem %s3, %s729
        %p731 = scmp.lt.s32.totalorder %s42, 1
        %s732 = scalar_select %p731, %s42, 1
        %s733 = scalar_lea.vmem %s5, %s732
        %p734 = scmp.lt.s32.totalorder %s42, 1
        %s735 = scalar_select %p734, %s42, 1
        %s736 = smul.addr %s735, 4
        %s737 = smul.addr %s736, 4
        %s738 = scalar_lea.vmem %s6, %s737
        %p739 = scmp.lt.s32.totalorder %s42, 1
        %s740 = scalar_select %p739, %s42, 1
        %s741 = scalar_lea.vmem %s7, %s740
        %p742 = scmp.lt.s32.totalorder %s42, 1
        %s743 = scalar_select %p742, %s42, 1
        %s744 = scalar_lea.vmem %s9, %s743
        %p745 = scmp.lt.s32.totalorder %s42, 1
        %s746 = scalar_select %p745, %s42, 1
        %s747 = scalar_lea.vmem %s10, %s746
        %p748 = scmp.lt.s32.totalorder %s42, 1
        %s749 = scalar_select %p748, %s42, 1
        %s750 = scalar_lea.vmem %s11, %s749
        %p751 = scmp.lt.s32.totalorder %s42, 1
        %s752 = scalar_select %p751, %s42, 1
        %s753 = scalar_lea.vmem %s12, %s752
        %p754 = scmp.lt.s32.totalorder %s42, 1
        %s755 = scalar_select %p754, %s42, 1
        %s756 = scalar_lea.vmem %s13, %s755
        %p758 = scmp.eq.s32.totalorder %s42, 0
        // Predicated region
        $region89: #{tpu_custom_call.1} parent=75 // pred_check
          %p759 = pneg %p758
        $region90: #{tpu_custom_call.1} parent=75 // pred_check_branch
          %761 = sbr.rel (%p759) target = $region92
        $region91: #{tpu_custom_call.1} parent=75 // pred_region
          %v762 = vld [vmem:[%s722] sm:$0xff]
          %vm763 = vcmask 261120
          %764 = vst.msk [vmem:[%s711] sm:$0xff] %vm763, %v762
        $region92: #{tpu_custom_call.1} parent=75 // pred_fallthru
          _
        %v765 = vld [vmem:[%s711] sm:$0xff]
        %v766 = vpack.c.bf16 %v765, %v765
        %v767 = vld [vmem:[%s727] sm:$0xf]
        %v768 = vld [vmem:[%s727 + $0x4] sm:$0xf]
        %v769 = vld [vmem:[%s727 + $0x8] sm:$0xf]
        %v770 = vld [vmem:[%s727 + $0xc] sm:$0xf]
        %v771 = vld [vmem:[%s730] sm:$0x1]
        %v773 = vlaneseq
        %v774 = vshrl.u32 %v773, 7
        %v775 = vsub.s32 0, %v774
        %v776 = vrot.slane %v771, %v775
        %v782 = vunpack.c.l.b16 %v767
        %v783 = vunpack.c.l.b16 %v768
        %v784 = vunpack.c.l.b16 %v769
        %v785 = vunpack.c.l.b16 %v770
        %v786 = vpack.c.b16 %v783, %v782
        %v787 = vpack.c.b16 %v785, %v784
        %vm790 = vcmask 261120
        %v792 = vsel %vm790, %v766, 0
        %794 = vmatprep.subr.bf16.mxu0 0
        %795 = vmatpush1.bf16.msra.mxu0 %v786
        %796 = vmatprep.subr.bf16.mxu0 0
        %797 = vmatpush1.bf16.msra.mxu0 %v787
        %798 = vmatprep.subr.bf16.mxu0 0
        %799 = vmatpush1.bf16.msra.mxu0 0
        %800 = vmatprep.subr.bf16.mxu0 0
        %801 = vmatpush1.bf16.msra.mxu0 0
        %802 = vmatprep.subr.bf16.mxu0 0
        %803 = vmatpush1.bf16.msra.mxu0 0
        %804 = vmatprep.subr.bf16.mxu0 0
        %805 = vmatpush1.bf16.msra.mxu0 0
        %806 = vmatprep.subr.bf16.mxu0 0
        %807 = vmatpush1.bf16.msra.mxu0 0
        %808 = vmatprep.subr.bf16.mxu0 0
        %809 = vmatpush1.bf16.msra.mxu0 0
        %810 = vmatprep.subr.bf16.mxu0 0
        %811 = vmatpush1.bf16.msra.mxu0 0
        %812 = vmatprep.subr.bf16.mxu0 0
        %813 = vmatpush1.bf16.msra.mxu0 0
        %814 = vmatprep.subr.bf16.mxu0 0
        %815 = vmatpush1.bf16.msra.mxu0 0
        %816 = vmatprep.subr.bf16.mxu0 0
        %817 = vmatpush1.bf16.msra.mxu0 0
        %818 = vmatprep.subr.bf16.mxu0 0
        %819 = vmatpush1.bf16.msra.mxu0 0
        %820 = vmatprep.subr.bf16.mxu0 0
        %821 = vmatpush1.bf16.msra.mxu0 0
        %822 = vmatprep.subr.bf16.mxu0 0
        %823 = vmatpush1.bf16.msra.mxu0 0
        %824 = vmatprep.subr.bf16.mxu0 0
        %825 = vmatpush1.bf16.msra.mxu0 0
        %826 = vmatprep.mubr.bf16.mxu0 0
        %827 = vmatmul.mubr.bf16.gmra.mrb[0].mxu0 %v792
        %v828 = vpop.f32.mrb[0].mxu0
        %v829 = vadd.f32 %v776, %v828
        %v830 = vpop.f32.mrb[0].mxu0
        %v831 = vpop.f32.mrb[0].mxu0
        %v832 = vpop.f32.mrb[0].mxu0
        %833 = vdwg.mxu0
        %v834 = vmul.f32 %v829, 0.35355338
        %836 = vrot.lane.b32.xlu0 %v834, 120
        %v837 = vpop.permute.xlu0 %836
        %839 = vrot.lane.b32.xlu0 %v834, 112
        %v840 = vpop.permute.xlu0 %839
        %842 = vrot.lane.b32.xlu0 %v834, 104
        %v843 = vpop.permute.xlu0 %842
        %v845 = vpack.c.bf16 %v834, %v834
        %v846 = vpack.c.bf16 %v837, %v837
        %v847 = vpack.c.bf16 %v840, %v840
        %v848 = vpack.c.bf16 %v843, %v843
        %850 = vrot.lane.b32.xlu0 %v829, 120
        %v851 = vpop.permute.xlu0 %850
        %853 = vrot.lane.b32.xlu0 %v829, 112
        %v854 = vpop.permute.xlu0 %853
        %856 = vrot.lane.b32.xlu0 %v829, 104
        %v857 = vpop.permute.xlu0 %856
        %v859 = vpack.c.bf16 %v829, %v829
        %v860 = vpack.c.bf16 %v851, %v851
        %v861 = vpack.c.bf16 %v854, %v854
        %v862 = vpack.c.bf16 %v857, %v857
        %v863 = vld [vmem:[#allocation2] sm:$0xff]
        %865 = vrot.lane.b32.xlu0 %v859, 96
        %v866 = vpop.permute.xlu0 %865
        %vm867 = vcmask 64512
        %v869 = vsel %vm867, %v845, 0
        %v872 = vsel %vm867, %v866, 0
        %874 = vmatprep.subr.bf16.mxu0 0
        %875 = vmatpush1.bf16.xpose.msra.mxu0 %v872
        %876 = vmatprep.subr.bf16.mxu0 0
        %877 = vmatpush1.bf16.xpose.msra.mxu0 0
        %878 = vmatprep.subr.bf16.mxu0 0
        %879 = vmatpush1.bf16.xpose.msra.mxu0 0
        %880 = vmatprep.subr.bf16.mxu0 0
        %881 = vmatpush1.bf16.xpose.msra.mxu0 0
        %882 = vmatprep.subr.bf16.mxu0 0
        %883 = vmatpush1.bf16.xpose.msra.mxu0 0
        %884 = vmatprep.subr.bf16.mxu0 0
        %885 = vmatpush1.bf16.xpose.msra.mxu0 0
        %886 = vmatprep.subr.bf16.mxu0 0
        %887 = vmatpush1.bf16.xpose.msra.mxu0 0
        %888 = vmatprep.subr.bf16.mxu0 0
        %889 = vmatpush1.bf16.xpose.msra.mxu0 0
        %890 = vmatprep.subr.bf16.mxu0 0
        %891 = vmatpush1.bf16.xpose.msra.mxu0 0
        %892 = vmatprep.subr.bf16.mxu0 0
        %893 = vmatpush1.bf16.xpose.msra.mxu0 0
        %894 = vmatprep.subr.bf16.mxu0 0
        %895 = vmatpush1.bf16.xpose.msra.mxu0 0
        %896 = vmatprep.subr.bf16.mxu0 0
        %897 = vmatpush1.bf16.xpose.msra.mxu0 0
        %898 = vmatprep.subr.bf16.mxu0 0
        %899 = vmatpush1.bf16.xpose.msra.mxu0 0
        %900 = vmatprep.subr.bf16.mxu0 0
        %901 = vmatpush1.bf16.xpose.msra.mxu0 0
        %902 = vmatprep.subr.bf16.mxu0 0
        %903 = vmatpush1.bf16.xpose.msra.mxu0 0
        %904 = vmatprep.subr.bf16.mxu0 0
        %905 = vmatpush1.bf16.xpose.msra.mxu0 0
        %906 = vmatprep.mubr.bf16.mxu0 0
        %907 = vmatmul.mubr.bf16.gmra.mrb[0].mxu0 %v869
        %v908 = vpop.f32.mrb[0].mxu0
        %v909 = vadd.f32 %v863, %v908
        %v910 = vpop.f32.mrb[0].mxu0
        %v911 = vpop.f32.mrb[0].mxu0
        %v912 = vpop.f32.mrb[0].mxu0
        %913 = vdwg.mxu0
        %915 = vrot.lane.b32.xlu0 %v860, 96
        %v916 = vpop.permute.xlu0 %915
        %v918 = vsel %vm867, %v846, 0
        %v921 = vsel %vm867, %v916, 0
        %923 = vmatprep.subr.bf16.mxu0 0
        %924 = vmatpush1.bf16.xpose.msra.mxu0 %v921
        %925 = vmatprep.subr.bf16.mxu0 0
        %926 = vmatpush1.bf16.xpose.msra.mxu0 0
        %927 = vmatprep.subr.bf16.mxu0 0
        %928 = vmatpush1.bf16.xpose.msra.mxu0 0
        %929 = vmatprep.subr.bf16.mxu0 0
        %930 = vmatpush1.bf16.xpose.msra.mxu0 0
        %931 = vmatprep.subr.bf16.mxu0 0
        %932 = vmatpush1.bf16.xpose.msra.mxu0 0
        %933 = vmatprep.subr.bf16.mxu0 0
        %934 = vmatpush1.bf16.xpose.msra.mxu0 0
        %935 = vmatprep.subr.bf16.mxu0 0
        %936 = vmatpush1.bf16.xpose.msra.mxu0 0
        %937 = vmatprep.subr.bf16.mxu0 0
        %938 = vmatpush1.bf16.xpose.msra.mxu0 0
        %939 = vmatprep.subr.bf16.mxu0 0
        %940 = vmatpush1.bf16.xpose.msra.mxu0 0
        %941 = vmatprep.subr.bf16.mxu0 0
        %942 = vmatpush1.bf16.xpose.msra.mxu0 0
        %943 = vmatprep.subr.bf16.mxu0 0
        %944 = vmatpush1.bf16.xpose.msra.mxu0 0
        %945 = vmatprep.subr.bf16.mxu0 0
        %946 = vmatpush1.bf16.xpose.msra.mxu0 0
        %947 = vmatprep.subr.bf16.mxu0 0
        %948 = vmatpush1.bf16.xpose.msra.mxu0 0
        %949 = vmatprep.subr.bf16.mxu0 0
        %950 = vmatpush1.bf16.xpose.msra.mxu0 0
        %951 = vmatprep.subr.bf16.mxu0 0
        %952 = vmatpush1.bf16.xpose.msra.mxu0 0
        %953 = vmatprep.subr.bf16.mxu0 0
        %954 = vmatpush1.bf16.xpose.msra.mxu0 0
        %955 = vmatprep.mubr.bf16.mxu0 0
        %956 = vmatmul.mubr.bf16.gmra.mrb[0].mxu0 %v918
        %v957 = vpop.f32.mrb[0].mxu0
        %v958 = vadd.f32 %v863, %v957
        %v959 = vpop.f32.mrb[0].mxu0
        %v960 = vpop.f32.mrb[0].mxu0
        %v961 = vpop.f32.mrb[0].mxu0
        %962 = vdwg.mxu0
        %964 = vrot.lane.b32.xlu0 %v861, 96
        %v965 = vpop.permute.xlu0 %964
        %v967 = vsel %vm867, %v847, 0
        %v970 = vsel %vm867, %v965, 0
        %972 = vmatprep.subr.bf16.mxu0 0
        %973 = vmatpush1.bf16.xpose.msra.mxu0 %v970
        %974 = vmatprep.subr.bf16.mxu0 0
        %975 = vmatpush1.bf16.xpose.msra.mxu0 0
        %976 = vmatprep.subr.bf16.mxu0 0
        %977 = vmatpush1.bf16.xpose.msra.mxu0 0
        %978 = vmatprep.subr.bf16.mxu0 0
        %979 = vmatpush1.bf16.xpose.msra.mxu0 0
        %980 = vmatprep.subr.bf16.mxu0 0
        %981 = vmatpush1.bf16.xpose.msra.mxu0 0
        %982 = vmatprep.subr.bf16.mxu0 0
        %983 = vmatpush1.bf16.xpose.msra.mxu0 0
        %984 = vmatprep.subr.bf16.mxu0 0
        %985 = vmatpush1.bf16.xpose.msra.mxu0 0
        %986 = vmatprep.subr.bf16.mxu0 0
        %987 = vmatpush1.bf16.xpose.msra.mxu0 0
        %988 = vmatprep.subr.bf16.mxu0 0
        %989 = vmatpush1.bf16.xpose.msra.mxu0 0
        %990 = vmatprep.subr.bf16.mxu0 0
        %991 = vmatpush1.bf16.xpose.msra.mxu0 0
        %992 = vmatprep.subr.bf16.mxu0 0
        %993 = vmatpush1.bf16.xpose.msra.mxu0 0
        %994 = vmatprep.subr.bf16.mxu0 0
        %995 = vmatpush1.bf16.xpose.msra.mxu0 0
        %996 = vmatprep.subr.bf16.mxu0 0
        %997 = vmatpush1.bf16.xpose.msra.mxu0 0
        %998 = vmatprep.subr.bf16.mxu0 0
        %999 = vmatpush1.bf16.xpose.msra.mxu0 0
        %1000 = vmatprep.subr.bf16.mxu0 0
        %1001 = vmatpush1.bf16.xpose.msra.mxu0 0
        %1002 = vmatprep.subr.bf16.mxu0 0
        %1003 = vmatpush1.bf16.xpose.msra.mxu0 0
        %1004 = vmatprep.mubr.bf16.mxu0 0
        %1005 = vmatmul.mubr.bf16.gmra.mrb[0].mxu0 %v967
        %v1006 = vpop.f32.mrb[0].mxu0
        %v1007 = vadd.f32 %v863, %v1006
        %v1008 = vpop.f32.mrb[0].mxu0
        %v1009 = vpop.f32.mrb[0].mxu0
        %v1010 = vpop.f32.mrb[0].mxu0
        %1011 = vdwg.mxu0
        %1013 = vrot.lane.b32.xlu0 %v862, 96
        %v1014 = vpop.permute.xlu0 %1013
        %v1016 = vsel %vm867, %v848, 0
        %v1019 = vsel %vm867, %v1014, 0
        %1021 = vmatprep.subr.bf16.mxu0 0
        %1022 = vmatpush1.bf16.xpose.msra.mxu0 %v1019
        %1023 = vmatprep.subr.bf16.mxu0 0
        %1024 = vmatpush1.bf16.xpose.msra.mxu0 0
        %1025 = vmatprep.subr.bf16.mxu0 0
        %1026 = vmatpush1.bf16.xpose.msra.mxu0 0
        %1027 = vmatprep.subr.bf16.mxu0 0
        %1028 = vmatpush1.bf16.xpose.msra.mxu0 0
        %1029 = vmatprep.subr.bf16.mxu0 0
        %1030 = vmatpush1.bf16.xpose.msra.mxu0 0
        %1031 = vmatprep.subr.bf16.mxu0 0
        %1032 = vmatpush1.bf16.xpose.msra.mxu0 0
        %1033 = vmatprep.subr.bf16.mxu0 0
        %1034 = vmatpush1.bf16.xpose.msra.mxu0 0
        %1035 = vmatprep.subr.bf16.mxu0 0
        %1036 = vmatpush1.bf16.xpose.msra.mxu0 0
        %1037 = vmatprep.subr.bf16.mxu0 0
        %1038 = vmatpush1.bf16.xpose.msra.mxu0 0
        %1039 = vmatprep.subr.bf16.mxu0 0
        %1040 = vmatpush1.bf16.xpose.msra.mxu0 0
        %1041 = vmatprep.subr.bf16.mxu0 0
        %1042 = vmatpush1.bf16.xpose.msra.mxu0 0
        %1043 = vmatprep.subr.bf16.mxu0 0
        %1044 = vmatpush1.bf16.xpose.msra.mxu0 0
        %1045 = vmatprep.subr.bf16.mxu0 0
        %1046 = vmatpush1.bf16.xpose.msra.mxu0 0
        %1047 = vmatprep.subr.bf16.mxu0 0
        %1048 = vmatpush1.bf16.xpose.msra.mxu0 0
        %1049 = vmatprep.subr.bf16.mxu0 0
        %1050 = vmatpush1.bf16.xpose.msra.mxu0 0
        %1051 = vmatprep.subr.bf16.mxu0 0
        %1052 = vmatpush1.bf16.xpose.msra.mxu0 0
        %1053 = vmatprep.mubr.bf16.mxu0 0
        %1054 = vmatmul.mubr.bf16.gmra.mrb[0].mxu0 %v1016
        %v1055 = vpop.f32.mrb[0].mxu0
        %v1056 = vadd.f32 %v863, %v1055
        %v1057 = vpop.f32.mrb[0].mxu0
        %v1058 = vpop.f32.mrb[0].mxu0
        %v1059 = vpop.f32.mrb[0].mxu0
        %1060 = vdwg.mxu0
        %v1061 = vsel %vm867, %v909, -inf
        %1062 = vmax.xlane.f32.xlu0 %v1061
        %v1063 = vpop.xlane.xlu0 %1062
        %v1064 = vsel %vm867, %v958, -inf
        %1065 = vmax.xlane.f32.xlu0 %v1064
        %v1066 = vpop.xlane.xlu0 %1065
        %v1067 = vsel %vm867, %v1007, -inf
        %1068 = vmax.xlane.f32.xlu0 %v1067
        %v1069 = vpop.xlane.xlu0 %1068
        %v1070 = vsel %vm867, %v1056, -inf
        %1071 = vmax.xlane.f32.xlu0 %v1070
        %v1072 = vpop.xlane.xlu0 %1071
        %v1073 = vsub.f32 %v909, %v1063
        %v1074 = vsub.f32 %v958, %v1066
        %v1075 = vsub.f32 %v1007, %v1069
        %v1076 = vsub.f32 %v1056, %v1072
        %v1077 = vmul.f32 %v1073, 1.442695
        %v1078 = vpow.pop %v1077
        %v1079 = vmul.f32 %v1074, 1.442695
        %v1080 = vpow.pop %v1079
        %v1081 = vmul.f32 %v1075, 1.442695
        %v1082 = vpow.pop %v1081
        %v1083 = vmul.f32 %v1076, 1.442695
        %v1084 = vpow.pop %v1083
        %v1085 = vsel %vm867, %v1078, 0.0
        %1086 = vadd.xlane.f32.xlu0 %v1085
        %v1087 = vpop.xlane.xlu0 %1086
        %v1088 = vsel %vm867, %v1080, 0.0
        %1089 = vadd.xlane.f32.xlu0 %v1088
        %v1090 = vpop.xlane.xlu0 %1089
        %v1091 = vsel %vm867, %v1082, 0.0
        %1092 = vadd.xlane.f32.xlu0 %v1091
        %v1093 = vpop.xlane.xlu0 %1092
        %v1094 = vsel %vm867, %v1084, 0.0
        %1095 = vadd.xlane.f32.xlu0 %v1094
        %v1096 = vpop.xlane.xlu0 %1095
        %v1097 = vrcp.pop %v1087
        %v1098 = vmul.f32 %v1078, %v1097
        %v1099 = vrcp.pop %v1090
        %v1100 = vmul.f32 %v1080, %v1099
        %v1101 = vrcp.pop %v1093
        %v1102 = vmul.f32 %v1082, %v1101
        %v1103 = vrcp.pop %v1096
        %v1104 = vmul.f32 %v1084, %v1103
        %v1105 = vpack.c.bf16 %v1098, %v1098
        %v1106 = vpack.c.bf16 %v1100, %v1100
        %v1107 = vpack.c.bf16 %v1102, %v1102
        %v1108 = vpack.c.bf16 %v1104, %v1104
        %1109 = vrot.lane.b32.xlu0 %v859, 64
        %v1110 = vpop.permute.xlu0 %1109
        %v1112 = vsel %vm867, %v1105, 0
        %vm1114 = vcmask 1043456
        %v1116 = vsel %vm1114, %v1110, 0
        %1118 = vmatprep.subr.bf16.mxu0 0
        %1119 = vmatpush1.bf16.msra.mxu0 %v1116
        %1120 = vmatprep.subr.bf16.mxu0 0
        %1121 = vmatpush1.bf16.msra.mxu0 0
        %1122 = vmatprep.subr.bf16.mxu0 0
        %1123 = vmatpush1.bf16.msra.mxu0 0
        %1124 = vmatprep.subr.bf16.mxu0 0
        %1125 = vmatpush1.bf16.msra.mxu0 0
        %1126 = vmatprep.subr.bf16.mxu0 0
        %1127 = vmatpush1.bf16.msra.mxu0 0
        %1128 = vmatprep.subr.bf16.mxu0 0
        %1129 = vmatpush1.bf16.msra.mxu0 0
        %1130 = vmatprep.subr.bf16.mxu0 0
        %1131 = vmatpush1.bf16.msra.mxu0 0
        %1132 = vmatprep.subr.bf16.mxu0 0
        %1133 = vmatpush1.bf16.msra.mxu0 0
        %1134 = vmatprep.subr.bf16.mxu0 0
        %1135 = vmatpush1.bf16.msra.mxu0 0
        %1136 = vmatprep.subr.bf16.mxu0 0
        %1137 = vmatpush1.bf16.msra.mxu0 0
        %1138 = vmatprep.subr.bf16.mxu0 0
        %1139 = vmatpush1.bf16.msra.mxu0 0
        %1140 = vmatprep.subr.bf16.mxu0 0
        %1141 = vmatpush1.bf16.msra.mxu0 0
        %1142 = vmatprep.subr.bf16.mxu0 0
        %1143 = vmatpush1.bf16.msra.mxu0 0
        %1144 = vmatprep.subr.bf16.mxu0 0
        %1145 = vmatpush1.bf16.msra.mxu0 0
        %1146 = vmatprep.subr.bf16.mxu0 0
        %1147 = vmatpush1.bf16.msra.mxu0 0
        %1148 = vmatprep.subr.bf16.mxu0 0
        %1149 = vmatpush1.bf16.msra.mxu0 0
        %1150 = vmatprep.mubr.bf16.mxu0 0
        %1151 = vmatmul.mubr.bf16.gmra.mrb[0].mxu0 %v1112
        %v1152 = vpop.f32.mrb[0].mxu0
        %v1153 = vadd.f32 0.0, %v1152
        %v1154 = vpop.f32.mrb[0].mxu0
        %v1155 = vpop.f32.mrb[0].mxu0
        %v1156 = vpop.f32.mrb[0].mxu0
        %1157 = vdwg.mxu0
        %1158 = vrot.lane.b32.xlu0 %v860, 64
        %v1159 = vpop.permute.xlu0 %1158
        %v1161 = vsel %vm867, %v1106, 0
        %v1164 = vsel %vm1114, %v1159, 0
        %1166 = vmatprep.subr.bf16.mxu0 0
        %1167 = vmatpush1.bf16.msra.mxu0 %v1164
        %1168 = vmatprep.subr.bf16.mxu0 0
        %1169 = vmatpush1.bf16.msra.mxu0 0
        %1170 = vmatprep.subr.bf16.mxu0 0
        %1171 = vmatpush1.bf16.msra.mxu0 0
        %1172 = vmatprep.subr.bf16.mxu0 0
        %1173 = vmatpush1.bf16.msra.mxu0 0
        %1174 = vmatprep.subr.bf16.mxu0 0
        %1175 = vmatpush1.bf16.msra.mxu0 0
        %1176 = vmatprep.subr.bf16.mxu0 0
        %1177 = vmatpush1.bf16.msra.mxu0 0
        %1178 = vmatprep.subr.bf16.mxu0 0
        %1179 = vmatpush1.bf16.msra.mxu0 0
        %1180 = vmatprep.subr.bf16.mxu0 0
        %1181 = vmatpush1.bf16.msra.mxu0 0
        %1182 = vmatprep.subr.bf16.mxu0 0
        %1183 = vmatpush1.bf16.msra.mxu0 0
        %1184 = vmatprep.subr.bf16.mxu0 0
        %1185 = vmatpush1.bf16.msra.mxu0 0
        %1186 = vmatprep.subr.bf16.mxu0 0
        %1187 = vmatpush1.bf16.msra.mxu0 0
        %1188 = vmatprep.subr.bf16.mxu0 0
        %1189 = vmatpush1.bf16.msra.mxu0 0
        %1190 = vmatprep.subr.bf16.mxu0 0
        %1191 = vmatpush1.bf16.msra.mxu0 0
        %1192 = vmatprep.subr.bf16.mxu0 0
        %1193 = vmatpush1.bf16.msra.mxu0 0
        %1194 = vmatprep.subr.bf16.mxu0 0
        %1195 = vmatpush1.bf16.msra.mxu0 0
        %1196 = vmatprep.subr.bf16.mxu0 0
        %1197 = vmatpush1.bf16.msra.mxu0 0
        %1198 = vmatprep.mubr.bf16.mxu0 0
        %1199 = vmatmul.mubr.bf16.gmra.mrb[0].mxu0 %v1161
        %v1200 = vpop.f32.mrb[0].mxu0
        %v1201 = vadd.f32 0.0, %v1200
        %v1202 = vpop.f32.mrb[0].mxu0
        %v1203 = vpop.f32.mrb[0].mxu0
        %v1204 = vpop.f32.mrb[0].mxu0
        %1205 = vdwg.mxu0
        %1206 = vrot.lane.b32.xlu0 %v861, 64
        %v1207 = vpop.permute.xlu0 %1206
        %v1209 = vsel %vm867, %v1107, 0
        %v1212 = vsel %vm1114, %v1207, 0
        %1214 = vmatprep.subr.bf16.mxu0 0
        %1215 = vmatpush1.bf16.msra.mxu0 %v1212
        %1216 = vmatprep.subr.bf16.mxu0 0
        %1217 = vmatpush1.bf16.msra.mxu0 0
        %1218 = vmatprep.subr.bf16.mxu0 0
        %1219 = vmatpush1.bf16.msra.mxu0 0
        %1220 = vmatprep.subr.bf16.mxu0 0
        %1221 = vmatpush1.bf16.msra.mxu0 0
        %1222 = vmatprep.subr.bf16.mxu0 0
        %1223 = vmatpush1.bf16.msra.mxu0 0
        %1224 = vmatprep.subr.bf16.mxu0 0
        %1225 = vmatpush1.bf16.msra.mxu0 0
        %1226 = vmatprep.subr.bf16.mxu0 0
        %1227 = vmatpush1.bf16.msra.mxu0 0
        %1228 = vmatprep.subr.bf16.mxu0 0
        %1229 = vmatpush1.bf16.msra.mxu0 0
        %1230 = vmatprep.subr.bf16.mxu0 0
        %1231 = vmatpush1.bf16.msra.mxu0 0
        %1232 = vmatprep.subr.bf16.mxu0 0
        %1233 = vmatpush1.bf16.msra.mxu0 0
        %1234 = vmatprep.subr.bf16.mxu0 0
        %1235 = vmatpush1.bf16.msra.mxu0 0
        %1236 = vmatprep.subr.bf16.mxu0 0
        %1237 = vmatpush1.bf16.msra.mxu0 0
        %1238 = vmatprep.subr.bf16.mxu0 0
        %1239 = vmatpush1.bf16.msra.mxu0 0
        %1240 = vmatprep.subr.bf16.mxu0 0
        %1241 = vmatpush1.bf16.msra.mxu0 0
        %1242 = vmatprep.subr.bf16.mxu0 0
        %1243 = vmatpush1.bf16.msra.mxu0 0
        %1244 = vmatprep.subr.bf16.mxu0 0
        %1245 = vmatpush1.bf16.msra.mxu0 0
        %1246 = vmatprep.mubr.bf16.mxu0 0
        %1247 = vmatmul.mubr.bf16.gmra.mrb[0].mxu0 %v1209
        %v1248 = vpop.f32.mrb[0].mxu0
        %v1249 = vadd.f32 0.0, %v1248
        %v1250 = vpop.f32.mrb[0].mxu0
        %v1251 = vpop.f32.mrb[0].mxu0
        %v1252 = vpop.f32.mrb[0].mxu0
        %1253 = vdwg.mxu0
        %1254 = vrot.lane.b32.xlu0 %v862, 64
        %v1255 = vpop.permute.xlu0 %1254
        %v1257 = vsel %vm867, %v1108, 0
        %v1260 = vsel %vm1114, %v1255, 0
        %1262 = vmatprep.subr.bf16.mxu0 0
        %1263 = vmatpush1.bf16.msra.mxu0 %v1260
        %1264 = vmatprep.subr.bf16.mxu0 0
        %1265 = vmatpush1.bf16.msra.mxu0 0
        %1266 = vmatprep.subr.bf16.mxu0 0
        %1267 = vmatpush1.bf16.msra.mxu0 0
        %1268 = vmatprep.subr.bf16.mxu0 0
        %1269 = vmatpush1.bf16.msra.mxu0 0
        %1270 = vmatprep.subr.bf16.mxu0 0
        %1271 = vmatpush1.bf16.msra.mxu0 0
        %1272 = vmatprep.subr.bf16.mxu0 0
        %1273 = vmatpush1.bf16.msra.mxu0 0
        %1274 = vmatprep.subr.bf16.mxu0 0
        %1275 = vmatpush1.bf16.msra.mxu0 0
        %1276 = vmatprep.subr.bf16.mxu0 0
        %1277 = vmatpush1.bf16.msra.mxu0 0
        %1278 = vmatprep.subr.bf16.mxu0 0
        %1279 = vmatpush1.bf16.msra.mxu0 0
        %1280 = vmatprep.subr.bf16.mxu0 0
        %1281 = vmatpush1.bf16.msra.mxu0 0
        %1282 = vmatprep.subr.bf16.mxu0 0
        %1283 = vmatpush1.bf16.msra.mxu0 0
        %1284 = vmatprep.subr.bf16.mxu0 0
        %1285 = vmatpush1.bf16.msra.mxu0 0
        %1286 = vmatprep.subr.bf16.mxu0 0
        %1287 = vmatpush1.bf16.msra.mxu0 0
        %1288 = vmatprep.subr.bf16.mxu0 0
        %1289 = vmatpush1.bf16.msra.mxu0 0
        %1290 = vmatprep.subr.bf16.mxu0 0
        %1291 = vmatpush1.bf16.msra.mxu0 0
        %1292 = vmatprep.subr.bf16.mxu0 0
        %1293 = vmatpush1.bf16.msra.mxu0 0
        %1294 = vmatprep.mubr.bf16.mxu0 0
        %1295 = vmatmul.mubr.bf16.gmra.mrb[0].mxu0 %v1257
        %v1296 = vpop.f32.mrb[0].mxu0
        %v1297 = vadd.f32 0.0, %v1296
        %v1298 = vpop.f32.mrb[0].mxu0
        %v1299 = vpop.f32.mrb[0].mxu0
        %v1300 = vpop.f32.mrb[0].mxu0
        %1301 = vdwg.mxu0
        %v1302 = vadd.f32 %v1098, 0.0
        %v1303 = vpack.c.bf16 %v1153, %v1153
        %v1304 = vld [vmem:[%s615] sm:$0xf]
        %v1305 = vadd.f32 %v1302, %v1100
        %v1306 = vpack.c.bf16 %v1201, %v1201
        %s1307 = scalar_lea.vmem %s615, 4 [#allocation5]
        %v1308 = vld [vmem:[%s1307] sm:$0xf]
        %v1310 = vsel %vm867, %v1306, 0
        %v1313 = vsel %vm1114, %v1308, 0
        %1315 = vmatprep.subr.bf16.mxu0 0
        %1316 = vmatpush1.bf16.msra.mxu0 %v1313
        %1317 = vmatprep.subr.bf16.mxu0 0
        %1318 = vmatpush1.bf16.msra.mxu0 0
        %1319 = vmatprep.subr.bf16.mxu0 0
        %1320 = vmatpush1.bf16.msra.mxu0 0
        %1321 = vmatprep.subr.bf16.mxu0 0
        %1322 = vmatpush1.bf16.msra.mxu0 0
        %1323 = vmatprep.subr.bf16.mxu0 0
        %1324 = vmatpush1.bf16.msra.mxu0 0
        %1325 = vmatprep.subr.bf16.mxu0 0
        %1326 = vmatpush1.bf16.msra.mxu0 0
        %1327 = vmatprep.subr.bf16.mxu0 0
        %1328 = vmatpush1.bf16.msra.mxu0 0
        %1329 = vmatprep.subr.bf16.mxu0 0
        %1330 = vmatpush1.bf16.msra.mxu0 0
        %1331 = vmatprep.subr.bf16.mxu0 0
        %1332 = vmatpush1.bf16.msra.mxu0 0
        %1333 = vmatprep.subr.bf16.mxu0 0
        %1334 = vmatpush1.bf16.msra.mxu0 0
        %1335 = vmatprep.subr.bf16.mxu0 0
        %1336 = vmatpush1.bf16.msra.mxu0 0
        %1337 = vmatprep.subr.bf16.mxu0 0
        %1338 = vmatpush1.bf16.msra.mxu0 0
        %1339 = vmatprep.subr.bf16.mxu0 0
        %1340 = vmatpush1.bf16.msra.mxu0 0
        %1341 = vmatprep.subr.bf16.mxu0 0
        %1342 = vmatpush1.bf16.msra.mxu0 0
        %1343 = vmatprep.subr.bf16.mxu0 0
        %1344 = vmatpush1.bf16.msra.mxu0 0
        %1345 = vmatprep.subr.bf16.mxu0 0
        %1346 = vmatpush1.bf16.msra.mxu0 0
        %1347 = vmatprep.mubr.bf16.mxu0 0
        %1348 = vmatmul.mubr.bf16.gmra.mrb[0].mxu0 %v1310
        %v1349 = vpop.f32.mrb[0].mxu0
        %v1350 = vadd.f32 0.0, %v1349
        %v1351 = vpop.f32.mrb[0].mxu0
        %v1352 = vpop.f32.mrb[0].mxu0
        %v1353 = vpop.f32.mrb[0].mxu0
        %1354 = vdwg.mxu0
        %v1356 = vsel %vm867, %v1303, 0
        %v1359 = vsel %vm1114, %v1304, 0
        %1361 = vmatprep.subr.bf16.mxu0 0
        %1362 = vmatpush1.bf16.msra.mxu0 %v1359
        %1363 = vmatprep.subr.bf16.mxu0 0
        %1364 = vmatpush1.bf16.msra.mxu0 0
        %1365 = vmatprep.subr.bf16.mxu0 0
        %1366 = vmatpush1.bf16.msra.mxu0 0
        %1367 = vmatprep.subr.bf16.mxu0 0
        %1368 = vmatpush1.bf16.msra.mxu0 0
        %1369 = vmatprep.subr.bf16.mxu0 0
        %1370 = vmatpush1.bf16.msra.mxu0 0
        %1371 = vmatprep.subr.bf16.mxu0 0
        %1372 = vmatpush1.bf16.msra.mxu0 0
        %1373 = vmatprep.subr.bf16.mxu0 0
        %1374 = vmatpush1.bf16.msra.mxu0 0
        %1375 = vmatprep.subr.bf16.mxu0 0
        %1376 = vmatpush1.bf16.msra.mxu0 0
        %1377 = vmatprep.subr.bf16.mxu0 0
        %1378 = vmatpush1.bf16.msra.mxu0 0
        %1379 = vmatprep.subr.bf16.mxu0 0
        %1380 = vmatpush1.bf16.msra.mxu0 0
        %1381 = vmatprep.subr.bf16.mxu0 0
        %1382 = vmatpush1.bf16.msra.mxu0 0
        %1383 = vmatprep.subr.bf16.mxu0 0
        %1384 = vmatpush1.bf16.msra.mxu0 0
        %1385 = vmatprep.subr.bf16.mxu0 0
        %1386 = vmatpush1.bf16.msra.mxu0 0
        %1387 = vmatprep.subr.bf16.mxu0 0
        %1388 = vmatpush1.bf16.msra.mxu0 0
        %1389 = vmatprep.subr.bf16.mxu0 0
        %1390 = vmatpush1.bf16.msra.mxu0 0
        %1391 = vmatprep.subr.bf16.mxu0 0
        %1392 = vmatpush1.bf16.msra.mxu0 0
        %1393 = vmatprep.mubr.bf16.mxu0 0
        %1394 = vmatmul.mubr.bf16.gmra.mrb[0].mxu0 %v1356
        %v1395 = vpop.f32.mrb[0].mxu0
        %v1396 = vadd.f32 %v1350, %v1395
        %v1397 = vpop.f32.mrb[0].mxu0
        %v1398 = vpop.f32.mrb[0].mxu0
        %v1399 = vpop.f32.mrb[0].mxu0
        %1400 = vdwg.mxu0
        %v1401 = vadd.f32 %v1305, %v1102
        %v1402 = vpack.c.bf16 %v1249, %v1249
        %s1403 = scalar_lea.vmem %s615, 8 [#allocation5]
        %v1404 = vld [vmem:[%s1403] sm:$0xf]
        %v1406 = vsel %vm867, %v1402, 0
        %v1409 = vsel %vm1114, %v1404, 0
        %1411 = vmatprep.subr.bf16.mxu0 0
        %1412 = vmatpush1.bf16.msra.mxu0 %v1409
        %1413 = vmatprep.subr.bf16.mxu0 0
        %1414 = vmatpush1.bf16.msra.mxu0 0
        %1415 = vmatprep.subr.bf16.mxu0 0
        %1416 = vmatpush1.bf16.msra.mxu0 0
        %1417 = vmatprep.subr.bf16.mxu0 0
        %1418 = vmatpush1.bf16.msra.mxu0 0
        %1419 = vmatprep.subr.bf16.mxu0 0
        %1420 = vmatpush1.bf16.msra.mxu0 0
        %1421 = vmatprep.subr.bf16.mxu0 0
        %1422 = vmatpush1.bf16.msra.mxu0 0
        %1423 = vmatprep.subr.bf16.mxu0 0
        %1424 = vmatpush1.bf16.msra.mxu0 0
        %1425 = vmatprep.subr.bf16.mxu0 0
        %1426 = vmatpush1.bf16.msra.mxu0 0
        %1427 = vmatprep.subr.bf16.mxu0 0
        %1428 = vmatpush1.bf16.msra.mxu0 0
        %1429 = vmatprep.subr.bf16.mxu0 0
        %1430 = vmatpush1.bf16.msra.mxu0 0
        %1431 = vmatprep.subr.bf16.mxu0 0
        %1432 = vmatpush1.bf16.msra.mxu0 0
        %1433 = vmatprep.subr.bf16.mxu0 0
        %1434 = vmatpush1.bf16.msra.mxu0 0
        %1435 = vmatprep.subr.bf16.mxu0 0
        %1436 = vmatpush1.bf16.msra.mxu0 0
        %1437 = vmatprep.subr.bf16.mxu0 0
        %1438 = vmatpush1.bf16.msra.mxu0 0
        %1439 = vmatprep.subr.bf16.mxu0 0
        %1440 = vmatpush1.bf16.msra.mxu0 0
        %1441 = vmatprep.subr.bf16.mxu0 0
        %1442 = vmatpush1.bf16.msra.mxu0 0
        %1443 = vmatprep.mubr.bf16.mxu0 0
        %1444 = vmatmul.mubr.bf16.gmra.mrb[0].mxu0 %v1406
        %v1445 = vpop.f32.mrb[0].mxu0
        %v1446 = vadd.f32 0.0, %v1445
        %v1447 = vpop.f32.mrb[0].mxu0
        %v1448 = vpop.f32.mrb[0].mxu0
        %v1449 = vpop.f32.mrb[0].mxu0
        %1450 = vdwg.mxu0
        %v1451 = vadd.f32 %v1396, %v1446
        %v1452 = vadd.f32 %v1401, %v1104
        %v1453 = vpack.c.bf16 %v1297, %v1297
        %s1454 = scalar_lea.vmem %s615, 12 [#allocation5]
        %v1455 = vld [vmem:[%s1454] sm:$0xf]
        %v1457 = vsel %vm867, %v1453, 0
        %v1460 = vsel %vm1114, %v1455, 0
        %1462 = vmatprep.subr.bf16.mxu0 0
        %1463 = vmatpush1.bf16.msra.mxu0 %v1460
        %1464 = vmatprep.subr.bf16.mxu0 0
        %1465 = vmatpush1.bf16.msra.mxu0 0
        %1466 = vmatprep.subr.bf16.mxu0 0
        %1467 = vmatpush1.bf16.msra.mxu0 0
        %1468 = vmatprep.subr.bf16.mxu0 0
        %1469 = vmatpush1.bf16.msra.mxu0 0
        %1470 = vmatprep.subr.bf16.mxu0 0
        %1471 = vmatpush1.bf16.msra.mxu0 0
        %1472 = vmatprep.subr.bf16.mxu0 0
        %1473 = vmatpush1.bf16.msra.mxu0 0
        %1474 = vmatprep.subr.bf16.mxu0 0
        %1475 = vmatpush1.bf16.msra.mxu0 0
        %1476 = vmatprep.subr.bf16.mxu0 0
        %1477 = vmatpush1.bf16.msra.mxu0 0
        %1478 = vmatprep.subr.bf16.mxu0 0
        %1479 = vmatpush1.bf16.msra.mxu0 0
        %1480 = vmatprep.subr.bf16.mxu0 0
        %1481 = vmatpush1.bf16.msra.mxu0 0
        %1482 = vmatprep.subr.bf16.mxu0 0
        %1483 = vmatpush1.bf16.msra.mxu0 0
        %1484 = vmatprep.subr.bf16.mxu0 0
        %1485 = vmatpush1.bf16.msra.mxu0 0
        %1486 = vmatprep.subr.bf16.mxu0 0
        %1487 = vmatpush1.bf16.msra.mxu0 0
        %1488 = vmatprep.subr.bf16.mxu0 0
        %1489 = vmatpush1.bf16.msra.mxu0 0
        %1490 = vmatprep.subr.bf16.mxu0 0
        %1491 = vmatpush1.bf16.msra.mxu0 0
        %1492 = vmatprep.subr.bf16.mxu0 0
        %1493 = vmatpush1.bf16.msra.mxu0 0
        %1494 = vmatprep.mubr.bf16.mxu0 0
        %1495 = vmatmul.mubr.bf16.gmra.mrb[0].mxu0 %v1457
        %v1496 = vpop.f32.mrb[0].mxu0
        %v1497 = vadd.f32 0.0, %v1496
        %v1498 = vpop.f32.mrb[0].mxu0
        %v1499 = vpop.f32.mrb[0].mxu0
        %v1500 = vpop.f32.mrb[0].mxu0
        %1501 = vdwg.mxu0
        %v1502 = vadd.f32 %v1451, %v1497
        %v1503 = vmul.f32 %v1452, 0.25
        %1504 = vst.msk [vmem:[%s718] sm:$0xff] %vm867, %v1503
        %v1505 = vld [vmem:[%s733] sm:$0x1]
        %v1507 = vlaneseq
        %v1508 = vshrl.u32 %v1507, 7
        %v1509 = vsub.s32 0, %v1508
        %v1510 = vrot.slane %v1505, %v1509
        %v1512 = vadd.f32 %v1502, %v1510
        %v1513 = vadd.f32 %v1512, %v765
        %v1514 = vld [vmem:[%s747] sm:$0x1]
        %v1515 = vld [vmem:[%s750] sm:$0x1]
        %v1516 = vsel %vm790, %v1513, 0.0
        %1517 = vadd.xlane.f32.xlu0 %v1516
        %v1518 = vpop.xlane.xlu0 %1517
        %v1519 = vrcp.pop 32.0
        %v1520 = vmul.f32 %v1518, %v1519
        %v1521 = vsub.f32 %v1513, %v1520
        %v1522 = vmul.f32 %v1521, %v1521
        %v1523 = vsel %vm790, %v1522, 0.0
        %1524 = vadd.xlane.f32.xlu0 %v1523
        %v1525 = vpop.xlane.xlu0 %1524
        %v1526 = vmul.f32 %v1525, %v1519
        %v1527 = vadd.f32 %v1526, 1e-06
        %v1528 = vrsqrt.pop %v1527
        %v1529 = vmul.f32 %v1521, %v1528
        %v1531 = vlaneseq
        %v1532 = vshrl.u32 %v1531, 7
        %v1533 = vsub.s32 0, %v1532
        %v1534 = vrot.slane %v1514, %v1533
        %v1536 = vmul.f32 %v1529, %v1534
        %v1538 = vlaneseq
        %v1539 = vshrl.u32 %v1538, 7
        %v1540 = vsub.s32 0, %v1539
        %v1541 = vrot.slane %v1515, %v1540
        %v1543 = vadd.f32 %v1536, %v1541
        %v1544 = vpack.c.bf16 %v1543, %v1543
        %v1545 = vld [vmem:[%s738] sm:$0xf]
        %v1546 = vld [vmem:[%s738 + $0x4] sm:$0xf]
        %v1547 = vld [vmem:[%s738 + $0x8] sm:$0xf]
        %v1548 = vld [vmem:[%s738 + $0xc] sm:$0xf]
        %v1549 = vld [vmem:[%s741] sm:$0x1]
        %v1551 = vlaneseq
        %v1552 = vshrl.u32 %v1551, 7
        %v1553 = vsub.s32 0, %v1552
        %v1554 = vrot.slane %v1549, %v1553
        %v1560 = vunpack.c.l.b16 %v1545
        %v1561 = vunpack.c.l.b16 %v1546
        %v1562 = vunpack.c.l.b16 %v1547
        %v1563 = vunpack.c.l.b16 %v1548
        %v1564 = vpack.c.b16 %v1561, %v1560
        %v1565 = vpack.c.b16 %v1563, %v1562
        %v1569 = vsel %vm790, %v1544, 0
        %1571 = vmatprep.subr.bf16.mxu0 0
        %1572 = vmatpush1.bf16.msra.mxu0 %v1564
        %1573 = vmatprep.subr.bf16.mxu0 0
        %1574 = vmatpush1.bf16.msra.mxu0 %v1565
        %1575 = vmatprep.subr.bf16.mxu0 0
        %1576 = vmatpush1.bf16.msra.mxu0 0
        %1577 = vmatprep.subr.bf16.mxu0 0
        %1578 = vmatpush1.bf16.msra.mxu0 0
        %1579 = vmatprep.subr.bf16.mxu0 0
        %1580 = vmatpush1.bf16.msra.mxu0 0
        %1581 = vmatprep.subr.bf16.mxu0 0
        %1582 = vmatpush1.bf16.msra.mxu0 0
        %1583 = vmatprep.subr.bf16.mxu0 0
        %1584 = vmatpush1.bf16.msra.mxu0 0
        %1585 = vmatprep.subr.bf16.mxu0 0
        %1586 = vmatpush1.bf16.msra.mxu0 0
        %1587 = vmatprep.subr.bf16.mxu0 0
        %1588 = vmatpush1.bf16.msra.mxu0 0
        %1589 = vmatprep.subr.bf16.mxu0 0
        %1590 = vmatpush1.bf16.msra.mxu0 0
        %1591 = vmatprep.subr.bf16.mxu0 0
        %1592 = vmatpush1.bf16.msra.mxu0 0
        %1593 = vmatprep.subr.bf16.mxu0 0
        %1594 = vmatpush1.bf16.msra.mxu0 0
        %1595 = vmatprep.subr.bf16.mxu0 0
        %1596 = vmatpush1.bf16.msra.mxu0 0
        %1597 = vmatprep.subr.bf16.mxu0 0
        %1598 = vmatpush1.bf16.msra.mxu0 0
        %1599 = vmatprep.subr.bf16.mxu0 0
        %1600 = vmatpush1.bf16.msra.mxu0 0
        %1601 = vmatprep.subr.bf16.mxu0 0
        %1602 = vmatpush1.bf16.msra.mxu0 0
        %1603 = vmatprep.mubr.bf16.mxu0 0
        %1604 = vmatmul.mubr.bf16.gmra.mrb[0].mxu0 %v1569
        %v1605 = vpop.f32.mrb[0].mxu0
        %v1606 = vadd.f32 %v1554, %v1605
        %v1607 = vpop.f32.mrb[0].mxu0
        %v1608 = vpop.f32.mrb[0].mxu0
        %v1609 = vpop.f32.mrb[0].mxu0
        %1610 = vdwg.mxu0
        %v1611 = vmax.f32 %v1606, 0.0
        %v1612 = vpack.c.bf16 %v1611, %v1611
        %v1613 = vld [vmem:[%s624] sm:$0xf]
        %v1614 = vld [vmem:[%s624 + $0x4] sm:$0xf]
        %v1615 = vld [vmem:[%s744] sm:$0x1]
        %v1617 = vlaneseq
        %v1618 = vshrl.u32 %v1617, 7
        %v1619 = vsub.s32 0, %v1618
        %v1620 = vrot.slane %v1615, %v1619
        %v1624 = vunpack.c.l.b16 %v1613
        %v1625 = vunpack.c.l.b16 %v1614
        %v1626 = vpack.c.b16 %v1625, %v1624
        %vm1628 = vcmask 130048
        %v1630 = vsel %vm1628, %v1612, 0
        %1632 = vmatprep.subr.bf16.mxu0 0
        %1633 = vmatpush1.bf16.msra.mxu0 %v1626
        %1634 = vmatprep.subr.bf16.mxu0 0
        %1635 = vmatpush1.bf16.msra.mxu0 0
        %1636 = vmatprep.subr.bf16.mxu0 0
        %1637 = vmatpush1.bf16.msra.mxu0 0
        %1638 = vmatprep.subr.bf16.mxu0 0
        %1639 = vmatpush1.bf16.msra.mxu0 0
        %1640 = vmatprep.subr.bf16.mxu0 0
        %1641 = vmatpush1.bf16.msra.mxu0 0
        %1642 = vmatprep.subr.bf16.mxu0 0
        %1643 = vmatpush1.bf16.msra.mxu0 0
        %1644 = vmatprep.subr.bf16.mxu0 0
        %1645 = vmatpush1.bf16.msra.mxu0 0
        %1646 = vmatprep.subr.bf16.mxu0 0
        %1647 = vmatpush1.bf16.msra.mxu0 0
        %1648 = vmatprep.subr.bf16.mxu0 0
        %1649 = vmatpush1.bf16.msra.mxu0 0
        %1650 = vmatprep.subr.bf16.mxu0 0
        %1651 = vmatpush1.bf16.msra.mxu0 0
        %1652 = vmatprep.subr.bf16.mxu0 0
        %1653 = vmatpush1.bf16.msra.mxu0 0
        %1654 = vmatprep.subr.bf16.mxu0 0
        %1655 = vmatpush1.bf16.msra.mxu0 0
        %1656 = vmatprep.subr.bf16.mxu0 0
        %1657 = vmatpush1.bf16.msra.mxu0 0
        %1658 = vmatprep.subr.bf16.mxu0 0
        %1659 = vmatpush1.bf16.msra.mxu0 0
        %1660 = vmatprep.subr.bf16.mxu0 0
        %1661 = vmatpush1.bf16.msra.mxu0 0
        %1662 = vmatprep.subr.bf16.mxu0 0
        %1663 = vmatpush1.bf16.msra.mxu0 0
        %1664 = vmatprep.mubr.bf16.mxu0 0
        %1665 = vmatmul.mubr.bf16.gmra.mrb[0].mxu0 %v1630
        %v1666 = vpop.f32.mrb[0].mxu0
        %v1667 = vadd.f32 %v1620, %v1666
        %v1668 = vpop.f32.mrb[0].mxu0
        %v1669 = vpop.f32.mrb[0].mxu0
        %v1670 = vpop.f32.mrb[0].mxu0
        %1671 = vdwg.mxu0
        %v1672 = vadd.f32 %v1543, %v1667
        %v1673 = vld [vmem:[%s753] sm:$0x1]
        %v1674 = vld [vmem:[%s756] sm:$0x1]
        %v1675 = vsel %vm790, %v1672, 0.0
        %1676 = vadd.xlane.f32.xlu0 %v1675
        %v1677 = vpop.xlane.xlu0 %1676
        %v1678 = vmul.f32 %v1677, %v1519
        %v1679 = vsub.f32 %v1672, %v1678
        %v1680 = vmul.f32 %v1679, %v1679
        %v1681 = vsel %vm790, %v1680, 0.0
        %1682 = vadd.xlane.f32.xlu0 %v1681
        %v1683 = vpop.xlane.xlu0 %1682
        %v1684 = vmul.f32 %v1683, %v1519
        %v1685 = vadd.f32 %v1684, 1e-06
        %v1686 = vrsqrt.pop %v1685
        %v1687 = vmul.f32 %v1679, %v1686
        %v1689 = vlaneseq
        %v1690 = vshrl.u32 %v1689, 7
        %v1691 = vsub.s32 0, %v1690
        %v1692 = vrot.slane %v1673, %v1691
        %v1694 = vmul.f32 %v1687, %v1692
        %v1696 = vlaneseq
        %v1697 = vshrl.u32 %v1696, 7
        %v1698 = vsub.s32 0, %v1697
        %v1699 = vrot.slane %v1674, %v1698
        %v1701 = vadd.f32 %v1694, %v1699
        %1702 = vst.msk [vmem:[%s711] sm:$0xff] %vm790, %v1701
        %s1703 = sand.u32 %s416, 1
        %s1704 = scalar_lea.sflag [#allocation4], %s1703
        %s1705 = sand.u32 %s416, 1
        %s1706 = smul.addr %s1705, 8
        %s1707 = scalar_lea.vmem [#allocation8], %s1706
        %s1708 = sand.u32 %s444, 1
        %s1709 = scalar_lea.sflag [#allocation10], %s1708
        %s1710 = sand.u32 %s444, 1
        %s1711 = smul.addr %s1710, 8
        %s1712 = scalar_lea.vmem [#allocation9], %s1711
        // Predicated region
        $region93: #{tpu_custom_call.1} parent=75 // pred_check
          %p1713 = pneg %p426
        $region94: #{tpu_custom_call.1} parent=75 // pred_check_branch
          %1715 = sbr.rel (%p1713) target = $region96
        $region95: #{tpu_custom_call.1} parent=75 // pred_region
          %s1717 = ssub.s32 128, 128
          %1718 = vsyncadd %s1704, %s1717
          %s1719 = smul.addr %s41, 128
          %s1720 = scalar_lea.hbm %s14, %s1719
          %s1722 = sshll.u32 %s1707, 4
          %s1723 = int_to_ptr.vmem [resolvable:$true] %s1722
          %1725 = dma.vmem_to_hbm [thread:$0]  %s1723, 128, %s1720, %s1704
        $region96: #{tpu_custom_call.1} parent=75 // pred_fallthru
          _
        // Predicated region
        $region97: #{tpu_custom_call.1} parent=75 // pred_check
          %p1726 = pneg %p454
        $region98: #{tpu_custom_call.1} parent=75 // pred_check_branch
          %1728 = sbr.rel (%p1726) target = $region100
        $region99: #{tpu_custom_call.1} parent=75 // pred_region
          %s1730 = ssub.s32 128, 128
          %1731 = vsyncadd %s1709, %s1730
          %s1732 = smul.addr %s42, 2
          %s1733 = sadd.s32 %s41, %s1732
          %s1734 = smul.addr %s1733, 128
          %s1735 = scalar_lea.hbm %s15, %s1734
          %s1737 = sshll.u32 %s1712, 4
          %s1738 = int_to_ptr.vmem [resolvable:$true] %s1737
          %1740 = dma.vmem_to_hbm [thread:$0]  %s1738, 128, %s1735, %s1709
        $region100: #{tpu_custom_call.1} parent=75 // pred_fallthru
          _
      $region76: #{tpu_custom_call.1} parent=5 // pred_fallthru
        _
      %p1741 = scmp.le.s32.totalorder 2, %s32
      // Predicated region
      $region101: #{tpu_custom_call.1} parent=5 // pred_check
        %p1742 = pneg %p1741
      $region102: #{tpu_custom_call.1} parent=5 // pred_check_branch
        %1744 = sbr.rel (%p1742) target = $region104
      $region103: #{tpu_custom_call.1} parent=5 // pred_region
        %s1745 = ssub.s32 %s32, 2
        // Predicated region
        $region105: #{tpu_custom_call.1} parent=103 // pred_check
          %p1746 = pneg %p432
        $region106: #{tpu_custom_call.1} parent=103 // pred_check_branch
          %1748 = sbr.rel (%p1746) target = $region108
        $region107: #{tpu_custom_call.1} parent=103 // pred_region
          %s1749 = sand.u32 %s417, 1
          %s1750 = scalar_lea.sflag [#allocation4], %s1749
          %s1751 = sand.u32 %s417, 1
          %s1752 = smul.addr %s1751, 8
          %s1753 = scalar_lea.vmem [#allocation8], %s1752
          %1754 = dma.done %s1750, 128
        $region108: #{tpu_custom_call.1} parent=103 // pred_fallthru
          _
        // Predicated region
        $region109: #{tpu_custom_call.1} parent=103 // pred_check
          %p1755 = pneg %p460
        $region110: #{tpu_custom_call.1} parent=103 // pred_check_branch
          %1757 = sbr.rel (%p1755) target = $region112
        $region111: #{tpu_custom_call.1} parent=103 // pred_region
          %s1758 = sand.u32 %s445, 1
          %s1759 = scalar_lea.sflag [#allocation10], %s1758
          %s1760 = sand.u32 %s445, 1
          %s1761 = smul.addr %s1760, 8
          %s1762 = scalar_lea.vmem [#allocation9], %s1761
          %1763 = dma.done %s1759, 128
        $region112: #{tpu_custom_call.1} parent=103 // pred_fallthru
          _
      $region104: #{tpu_custom_call.1} parent=5 // pred_fallthru
        _
    $region6: #{tpu_custom_call.1} parent=1 // loop_footer
      %s36 = sadd.s32 1, %s32
    $region7: #{tpu_custom_call.1} parent=1 // loop_footer_branch
      %31 = sbr.rel target = $region3
    $region8: #{tpu_custom_call.1} parent=1 // loop_exit
      _
    %1764 = vsyncpa [#allocation3], 1
    %s1765 = scalar_lea.sflag [#allocation3], 1
    %1766 = vsyncpa %s1765, 1
    %1767 = vsyncpa [#allocation6], 1
    %s1768 = scalar_lea.sflag [#allocation6], 1
    %1769 = vsyncpa %s1768, 1
    %1770 = vsyncpa [#allocation4], 1
    %s1771 = scalar_lea.sflag [#allocation4], 1
    %1772 = vsyncpa %s1771, 1
    %1773 = vsyncpa [#allocation10], 1
    %s1774 = scalar_lea.sflag [#allocation10], 1
    %1775 = vsyncpa %s1774, 1

</llo_original>
